<compile_context>
chip_gen: v7x
topology: tpu7x:2x2x1
jax: 0.10.0
libtpu: 0.0.40
codegen_flags: <defaults>
</compile_context>

<pallas_src>
import functools

import jax
import jax.numpy as jnp
from jax import lax
from jax.experimental import pallas as pl
from jax.experimental.pallas import tpu as pltpu

_LANE = 128


def _pair(v):
    return (v, v) if isinstance(v, int) else tuple(v)


def _round_up(x, m):
    return ((x + m - 1) // m) * m


def _sublane(dtype):
    # sublane tile: 8 for 4-byte, 16 for 2-byte, 32 for 1-byte dtypes.
    return 8 * max(1, 4 // jnp.dtype(dtype).itemsize)


def _conv_bn_kernel(x_ref, w_ref, scale_ref, bias_ref, o_ref,
                    *, KH, KW, sh, sw, dh, dw, im2col):
    """One (batch, output-row-tile) grid step.

    x_ref:     (1, Hp, Wp, Cin_k)       padded input, resident across the row axis
    w_ref:     (KH*KW, Cin_k, Cout_pad) weights, tap-major
    scale_ref: (1, Cout_pad)            fused BN scale (f32)
    bias_ref:  (1, Cout_pad)            fused BN bias  (f32)
    o_ref:     (1, TH, Wop, Cout_pad)
    """
    TH, Wop, Cp = o_ref.shape[1], o_ref.shape[2], o_ref.shape[3]
    Cin = x_ref.shape[3]

    i = pl.program_id(1)
    row0 = pl.multiple_of(i * (TH * sh), TH * sh)

    def load_tap(kh, kw):
        h0 = row0 + kh * dh
        w0 = kw * dw
        if sh == 1 and sw == 1:
            return x_ref[0, pl.ds(h0, TH), pl.ds(w0, Wop), :]
        # stride > 1 fallback (unused by LFTransNet): full span then subsample.
        span_h = (TH - 1) * sh + 1
        span_w = (Wop - 1) * sw + 1
        return x_ref[0, pl.ds(h0, span_h), pl.ds(w0, span_w), :][::sh, ::sw, :]

    if im2col:
        # Cin_k is a multiple of 128: the concat is free block placement and a
        # single MXU matmul produces the whole tile.
        taps = [load_tap(kh, kw) for kh in range(KH) for kw in range(KW)]
        pmat = jnp.concatenate(taps, axis=-1).reshape(TH * Wop, KH * KW * Cin)
        wmat = w_ref[...].reshape(KH * KW * Cin, Cp)
        acc = jnp.dot(pmat, wmat, preferred_element_type=jnp.float32)
    else:
        # Small / lane-misaligned Cin: per-tap matmuls accumulated in f32
        # (same MXU work, no cross-lane relayout from an unaligned concat).
        acc = None
        for kh in range(KH):
            for kw in range(KW):
                pm = load_tap(kh, kw).reshape(TH * Wop, Cin)
                part = jnp.dot(pm, w_ref[kh * KW + kw],
                               preferred_element_type=jnp.float32)
                acc = part if acc is None else acc + part

    y = acc * scale_ref[0] + bias_ref[0]                    # (TH*Wop, Cp) f32
    o_ref[0] = y.reshape(TH, Wop, Cp).astype(o_ref.dtype)   # dense store


def basic_conv2d(x_nhwc, weight, gamma, beta, running_mean, running_var,
                 *, stride=1, padding=0, dilation=1, eps=1e-5,
                 compute_dtype=jnp.bfloat16, target_rows=256):
    """x_nhwc: (N, H, W, Cin); weight: (KH, KW, Cin, Cout) -> (N, Ho, Wo, Cout)."""
    N, H, W, Cin = x_nhwc.shape
    KH, KW, _, Cout = weight.shape
    sh, sw = _pair(stride)
    ph, pw = _pair(padding)
    dh, dw = _pair(dilation)
    out_dtype = x_nhwc.dtype

    Ho = (H + 2 * ph - dh * (KH - 1) - 1) // sh + 1
    Wo = (W + 2 * pw - dw * (KW - 1) - 1) // sw + 1

    # Lane-dense output channels.
    Cp = _round_up(Cout, _LANE)

    # Sublane-aligned merged M: pad output width so reshapes / stores are free.
    m_align = max(_sublane(out_dtype), _sublane(compute_dtype))
    Wop = _round_up(Wo, m_align)

    # Row tile: fill ~target_rows MXU rows per step; tail handled by padding
    # Ho up to a multiple of TH (tail rows compute over a zero halo, sliced off).
    TH = max(1, min(Ho, target_rows // Wop))
    Ho_pad = _round_up(Ho, TH)

    # im2col only when the tap concat is lane aligned (or <=25% channel pad).
    Cin_pad = _round_up(Cin, _LANE)
    use_im2col = (KH * KW > 1) and (
        Cin % _LANE == 0 or (Cin > _LANE and 4 * Cin_pad <= 5 * Cin))
    Cin_k = Cin_pad if use_im2col else Cin

    # Spatial zero padding (conv halo + extra rows/cols so padded output stays
    # in-bounds), fused with the compute-dtype cast.
    need_h = (Ho_pad - 1) * sh + (KH - 1) * dh + 1
    need_w = (Wop - 1) * sw + (KW - 1) * dw + 1
    xp = jnp.pad(
        x_nhwc,
        ((0, 0),
         (ph, ph + max(0, need_h - (H + 2 * ph))),
         (pw, pw + max(0, need_w - (W + 2 * pw))),
         (0, Cin_k - Cin))).astype(compute_dtype)
    Hp, Wp = xp.shape[1], xp.shape[2]

    # Tap-major weights (kh*KW+kw, cin_k, cout_pad); padded channels are zeros.
    wp = jnp.pad(weight, ((0, 0), (0, 0), (0, Cin_k - Cin), (0, Cp - Cout)))
    w3d = wp.reshape(KH * KW, Cin_k, Cp).astype(compute_dtype)

    # Fold BN into per-channel f32 scale / bias, padded to Cout_pad.
    scale = (gamma / jnp.sqrt(running_var + eps)).astype(jnp.float32)
    bias = beta.astype(jnp.float32) - running_mean.astype(jnp.float32) * scale
    scale = jnp.pad(scale, (0, Cp - Cout)).reshape(1, Cp)
    bias = jnp.pad(bias, (0, Cp - Cout)).reshape(1, Cp)

    grid = (N, Ho_pad // TH)
    kernel = functools.partial(_conv_bn_kernel, KH=KH, KW=KW, sh=sh, sw=sw,
                               dh=dh, dw=dw, im2col=use_im2col)

    in_itemsize = jnp.dtype(compute_dtype).itemsize
    out_itemsize = jnp.dtype(out_dtype).itemsize
    flops = 2 * N * Ho_pad * Wop * KH * KW * Cin_k * Cp
    bytes_accessed = int(
        N * Hp * Wp * Cin_k * in_itemsize          # input (once per batch)
        + KH * KW * Cin_k * Cp * in_itemsize       # weights
        + 2 * Cp * 4                               # scale / bias
        + N * Ho_pad * Wop * Cp * out_itemsize)    # padded output

    # Per-generation VMEM limit (v7x: 64 MiB physical, v5e/v6e: 128 MiB).
    try:
        vmem_cap = int(pltpu.get_tpu_info().vmem_capacity_bytes)
    except Exception:
        vmem_cap = 64 * 1024 * 1024
    vmem_limit = int(max(32 * 1024 * 1024, vmem_cap - 16 * 1024 * 1024))

    def make_call(single_buffer_resident):
        def resident(block_shape, index_map):
            if single_buffer_resident:
                return pl.BlockSpec(block_shape, index_map,
                                    pipeline_mode=pl.Buffered(1))
            return pl.BlockSpec(block_shape, index_map)

        return pl.pallas_call(
            kernel,
            out_shape=jax.ShapeDtypeStruct((N, Ho_pad, Wop, Cp), out_dtype),
            grid_spec=pltpu.PrefetchScalarGridSpec(
                num_scalar_prefetch=0,
                grid=grid,
                in_specs=[
                    # Full padded image for this batch; constant in the row
                    # axis -> stays resident across row tiles.
                    resident((1, Hp, Wp, Cin_k), lambda n, i: (n, 0, 0, 0)),
                    resident((KH * KW, Cin_k, Cp), lambda n, i: (0, 0, 0)),
                    resident((1, Cp), lambda n, i: (0, 0)),
                    resident((1, Cp), lambda n, i: (0, 0)),
                ],
                out_specs=pl.BlockSpec((1, TH, Wop, Cp),
                                       lambda n, i: (n, i, 0, 0)),
            ),
            compiler_params=pltpu.CompilerParams(
                dimension_semantics=("parallel", "parallel"),
                vmem_limit_bytes=vmem_limit),
            cost_estimate=pl.CostEstimate(
                flops=flops, transcendentals=0,
                bytes_accessed=bytes_accessed),
        )

    # Prefer single-buffered resident operands (halves their VMEM footprint,
    # critical for large layers on v7x's 64 MiB); fall back to default
    # double-buffering if this JAX build rejects pipeline_mode/Buffered(1).
    try:
        out_padded = make_call(True)(xp, w3d, scale, bias)
    except Exception:
        out_padded = make_call(False)(xp, w3d, scale, bias)

    return out_padded[:, :Ho, :Wo, :Cout]


def _reference(x_nhwc, weight, gamma, beta, running_mean, running_var,
               *, stride, padding, dilation, eps=1e-5,
               compute_dtype=jnp.bfloat16):
    sh, sw = _pair(stride)
    ph, pw = _pair(padding)
    dh, dw = _pair(dilation)
    out = lax.conv_general_dilated(
        x_nhwc.astype(compute_dtype), weight.astype(compute_dtype),
        window_strides=(sh, sw),
        padding=((ph, ph), (pw, pw)),
        rhs_dilation=(dh, dw),
        dimension_numbers=("NHWC", "HWIO", "NHWC"),
        preferred_element_type=jnp.float32)
    scale = gamma / jnp.sqrt(running_var + eps)
    bias = beta - running_mean * scale
    return (out * scale + bias).astype(x_nhwc.dtype)


if __name__ == "__main__":
    # Configurations mirroring BasicConv2d uses inside LFTransNet:
    #   1x1 projections, asymmetric 1x3 / 3x1, dilated 3x3, odd spatial sizes
    #   (11/22/44 scales), and the conv_cat-style 128->32 3x3 (im2col path).
    N = 2
    configs = [
        dict(Cin=4, Cout=8, k=(1, 1), stride=1, padding=(0, 0),
             dilation=(1, 1), H=16, W=16),
        dict(Cin=8, Cout=8, k=(1, 3), stride=1, padding=(0, 1),
             dilation=(1, 1), H=16, W=16),
        dict(Cin=8, Cout=8, k=(3, 1), stride=1, padding=(1, 0),
             dilation=(1, 1), H=16, W=16),
        dict(Cin=8, Cout=8, k=(3, 3), stride=1, padding=(3, 3),
             dilation=(3, 3), H=16, W=16),
        dict(Cin=8, Cout=8, k=(3, 3), stride=1, padding=(1, 1),
             dilation=(1, 1), H=22, W=22),          # odd size -> tail row tile
        dict(Cin=128, Cout=32, k=(3, 3), stride=1, padding=(1, 1),
             dilation=(1, 1), H=16, W=16),          # conv_cat-style, im2col
    ]

    key = jax.random.PRNGKey(0)
    for cfg in configs:
        Cin, Cout = cfg["Cin"], cfg["Cout"]
        KH, KW = cfg["k"]
        H, W = cfg["H"], cfg["W"]
        key, kx, kw_, kg, kb, km, kv = jax.random.split(key, 7)

        x = jax.random.normal(kx, (N, H, W, Cin), dtype=jnp.float32)
        weight = jax.random.normal(kw_, (KH, KW, Cin, Cout), dtype=jnp.float32) * 0.1
        gamma = jax.random.normal(kg, (Cout,), dtype=jnp.float32) * 0.1 + 1.0
        beta = jax.random.normal(kb, (Cout,), dtype=jnp.float32) * 0.1
        running_mean = jax.random.normal(km, (Cout,), dtype=jnp.float32) * 0.1
        running_var = jax.nn.softplus(
            jax.random.normal(kv, (Cout,), dtype=jnp.float32)) + 0.5

        out = basic_conv2d(x, weight, gamma, beta, running_mean, running_var,
                           stride=cfg["stride"], padding=cfg["padding"],
                           dilation=cfg["dilation"])
        out = jax.block_until_ready(out)

        ref = _reference(x, weight, gamma, beta, running_mean, running_var,
                         stride=cfg["stride"], padding=cfg["padding"],
                         dilation=cfg["dilation"])
        assert out.shape == ref.shape, (out.shape, ref.shape)
        assert jnp.allclose(out, ref, atol=2e-3, rtol=2e-3), \
            f"mismatch vs reference for config {cfg}"

    print("KERNEL_OK")
</pallas_src>

<mosaic_0001>
module attributes {stable_mosaic.version = 11 : i64} {
  func.func @_conv_bn_kernel(%arg0: i32, %arg1: i32, %arg2: memref<1x16x16x4xbf16, #tpu.memory_space<vmem>>, %arg3: memref<1x4x128xbf16, #tpu.memory_space<vmem>>, %arg4: memref<1x128xf32, #tpu.memory_space<vmem>>, %arg5: memref<1x128xf32, #tpu.memory_space<vmem>>, %arg6: memref<1x16x16x128xf32, #tpu.memory_space<vmem>>) attributes {dimension_semantics = [#tpu.dimension_semantics<parallel>, #tpu.dimension_semantics<parallel>], iteration_bounds = array<i64: 2, 1>, scalar_prefetch = 0 : i64, scratch_operands = 0 : i64, tpu.core_type = #tpu.core_type<tc>, window_params = [{pipeline_mode = #tpu.pipeline_mode<synchronous>, transform_indices = @transform_0, window_bounds = array<i64: 1, 16, 16, 4>}, {pipeline_mode = #tpu.pipeline_mode<synchronous>, transform_indices = @transform_1, window_bounds = array<i64: 1, 4, 128>}, {pipeline_mode = #tpu.pipeline_mode<synchronous>, transform_indices = @transform_2, window_bounds = array<i64: 1, 128>}, {pipeline_mode = #tpu.pipeline_mode<synchronous>, transform_indices = @transform_3, window_bounds = array<i64: 1, 128>}, {transform_indices = @transform_4, window_bounds = array<i64: 1, 16, 16, 128>}]} {
    %c16_i32 = arith.constant 16 : i32
    %0 = arith.muli %arg1, %c16_i32 : i32
    %1 = tpu.assume_multiple %0, 16 : i32
    %c0_i32 = arith.constant 0 : i32
    %2 = arith.addi %1, %c0_i32 : i32
    %c0 = arith.constant 0 : index
    %3 = arith.index_cast %2 : i32 to index
    %c0_0 = arith.constant 0 : index
    %c0_1 = arith.constant 0 : index
    %4 = vector.load %arg2[%c0, %3, %c0_0, %c0_1] : memref<1x16x16x4xbf16, #tpu.memory_space<vmem>>, vector<1x16x16x4xbf16>
    %5 = vector.shape_cast %4 : vector<1x16x16x4xbf16> to vector<16x16x4xbf16>
    %6 = vector.shape_cast %5 : vector<16x16x4xbf16> to vector<256x4xbf16>
    %c0_2 = arith.constant 0 : index
    %c0_3 = arith.constant 0 : index
    %c0_4 = arith.constant 0 : index
    %7 = vector.load %arg3[%c0_2, %c0_3, %c0_4] : memref<1x4x128xbf16, #tpu.memory_space<vmem>>, vector<1x4x128xbf16>
    %8 = vector.shape_cast %7 : vector<1x4x128xbf16> to vector<4x128xbf16>
    %cst = arith.constant dense<0.000000e+00> : vector<256x128xf32>
    %9 = tpu.matmul %6, %8, %cst {dimension_numbers = #tpu.dot_dimension_numbers<[1], [0], [0], [1], [0, 0, 1, 1], [], []>} : vector<256x4xbf16>, vector<4x128xbf16>, vector<256x128xf32> -> vector<256x128xf32>
    %c0_5 = arith.constant 0 : index
    %c0_6 = arith.constant 0 : index
    %10 = vector.load %arg4[%c0_5, %c0_6] : memref<1x128xf32, #tpu.memory_space<vmem>>, vector<1x128xf32>
    %11 = vector.shape_cast %10 : vector<1x128xf32> to vector<128xf32>
    %12 = vector.shape_cast %11 : vector<128xf32> to vector<1x128xf32>
    %13 = vector.broadcast %12 : vector<1x128xf32> to vector<256x128xf32>
    %14 = arith.mulf %9, %13 : vector<256x128xf32>
    %c0_7 = arith.constant 0 : index
    %c0_8 = arith.constant 0 : index
    %15 = vector.load %arg5[%c0_7, %c0_8] : memref<1x128xf32, #tpu.memory_space<vmem>>, vector<1x128xf32>
    %16 = vector.shape_cast %15 : vector<1x128xf32> to vector<128xf32>
    %17 = vector.shape_cast %16 : vector<128xf32> to vector<1x128xf32>
    %18 = vector.broadcast %17 : vector<1x128xf32> to vector<256x128xf32>
    %19 = arith.addf %14, %18 : vector<256x128xf32>
    %20 = vector.shape_cast %19 : vector<256x128xf32> to vector<16x16x128xf32>
    %c0_9 = arith.constant 0 : index
    %c0_10 = arith.constant 0 : index
    %c0_11 = arith.constant 0 : index
    %c0_12 = arith.constant 0 : index
    %21 = vector.load %arg6[%c0_9, %c0_10, %c0_11, %c0_12] : memref<1x16x16x128xf32, #tpu.memory_space<vmem>>, vector<1x16x16x128xf32>
    %22 = vector.shape_cast %21 : vector<1x16x16x128xf32> to vector<16x16x128xf32>
    %23 = vector.shape_cast %20 : vector<16x16x128xf32> to vector<1x16x16x128xf32>
    tpu.vector_store %arg6[%c0_9, %c0_10, %c0_11, %c0_12], %23 {strides = array<i32>} : memref<1x16x16x128xf32, #tpu.memory_space<vmem>>, vector<1x16x16x128xf32>,
    return
  }
  func.func @transform_0(%arg0: i32, %arg1: i32) -> (i32, i32, i32, i32) {
    %c0_i32 = arith.constant 0 : i32
    %c0_i32_0 = arith.constant 0 : i32
    %c0_i32_1 = arith.constant 0 : i32
    %c0_i32_2 = arith.constant 0 : i32
    return %arg0, %c0_i32, %c0_i32_0, %c0_i32_1 : i32, i32, i32, i32
  }
  func.func @transform_1(%arg0: i32, %arg1: i32) -> (i32, i32, i32) {
    %c0_i32 = arith.constant 0 : i32
    %c0_i32_0 = arith.constant 0 : i32
    %c0_i32_1 = arith.constant 0 : i32
    %c0_i32_2 = arith.constant 0 : i32
    return %c0_i32, %c0_i32_0, %c0_i32_1 : i32, i32, i32
  }
  func.func @transform_2(%arg0: i32, %arg1: i32) -> (i32, i32) {
    %c0_i32 = arith.constant 0 : i32
    %c0_i32_0 = arith.constant 0 : i32
    %c0_i32_1 = arith.constant 0 : i32
    return %c0_i32, %c0_i32_0 : i32, i32
  }
  func.func @transform_3(%arg0: i32, %arg1: i32) -> (i32, i32) {
    %c0_i32 = arith.constant 0 : i32
    %c0_i32_0 = arith.constant 0 : i32
    %c0_i32_1 = arith.constant 0 : i32
    return %c0_i32, %c0_i32_0 : i32, i32
  }
  func.func @transform_4(%arg0: i32, %arg1: i32) -> (i32, i32, i32, i32) {
    %c0_i32 = arith.constant 0 : i32
    %c0_i32_0 = arith.constant 0 : i32
    %c0_i32_1 = arith.constant 0 : i32
    return %arg0, %arg1, %c0_i32, %c0_i32_0 : i32, i32, i32, i32
  }
}

module attributes {stable_mosaic.version = 11 : i64} {
  func.func @_conv_bn_kernel(%arg0: i32, %arg1: i32, %arg2: memref<1x16x16x4xbf16, #tpu.memory_space<vmem>>, %arg3: memref<1x4x128xbf16, #tpu.memory_space<vmem>>, %arg4: memref<1x128xf32, #tpu.memory_space<vmem>>, %arg5: memref<1x128xf32, #tpu.memory_space<vmem>>, %arg6: memref<1x16x16x128xf32, #tpu.memory_space<vmem>>) attributes {dimension_semantics = [#tpu.dimension_semantics<parallel>, #tpu.dimension_semantics<parallel>], iteration_bounds = array<i64: 2, 1>, scalar_prefetch = 0 : i64, scratch_operands = 0 : i64, tpu.core_type = #tpu.core_type<tc>, window_params = [{transform_indices = @transform_0, window_bounds = array<i64: 1, 16, 16, 4>}, {pipeline_mode = #tpu.pipeline_mode<synchronous>, transform_indices = @transform_1, window_bounds = array<i64: 1, 4, 128>}, {pipeline_mode = #tpu.pipeline_mode<synchronous>, transform_indices = @transform_2, window_bounds = array<i64: 1, 128>}, {pipeline_mode = #tpu.pipeline_mode<synchronous>, transform_indices = @transform_3, window_bounds = array<i64: 1, 128>}, {transform_indices = @transform_4, window_bounds = array<i64: 1, 16, 16, 128>}]} {
    %c16_i32 = arith.constant 16 : i32
    %0 = arith.muli %arg1, %c16_i32 : i32
    %1 = tpu.assume_multiple %0, 16 : i32
    %c0_i32 = arith.constant 0 : i32
    %2 = arith.addi %1, %c0_i32 : i32
    %c0 = arith.constant 0 : index
    %3 = arith.index_cast %2 : i32 to index
    %c0_0 = arith.constant 0 : index
    %c0_1 = arith.constant 0 : index
    %4 = vector.load %arg2[%c0, %3, %c0_0, %c0_1] : memref<1x16x16x4xbf16, #tpu.memory_space<vmem>>, vector<1x16x16x4xbf16>
    %5 = vector.shape_cast %4 : vector<1x16x16x4xbf16> to vector<16x16x4xbf16>
    %6 = vector.shape_cast %5 : vector<16x16x4xbf16> to vector<256x4xbf16>
    %c0_2 = arith.constant 0 : index
    %c0_3 = arith.constant 0 : index
    %c0_4 = arith.constant 0 : index
    %7 = vector.load %arg3[%c0_2, %c0_3, %c0_4] : memref<1x4x128xbf16, #tpu.memory_space<vmem>>, vector<1x4x128xbf16>
    %8 = vector.shape_cast %7 : vector<1x4x128xbf16> to vector<4x128xbf16>
    %cst = arith.constant dense<0.000000e+00> : vector<256x128xf32>
    %9 = tpu.matmul %6, %8, %cst {dimension_numbers = #tpu.dot_dimension_numbers<[1], [0], [0], [1], [0, 0, 1, 1], [], []>} : vector<256x4xbf16>, vector<4x128xbf16>, vector<256x128xf32> -> vector<256x128xf32>
    %c0_5 = arith.constant 0 : index
    %c0_6 = arith.constant 0 : index
    %10 = vector.load %arg4[%c0_5, %c0_6] : memref<1x128xf32, #tpu.memory_space<vmem>>, vector<1x128xf32>
    %11 = vector.shape_cast %10 : vector<1x128xf32> to vector<128xf32>
    %12 = vector.shape_cast %11 : vector<128xf32> to vector<1x128xf32>
    %13 = vector.broadcast %12 : vector<1x128xf32> to vector<256x128xf32>
    %14 = arith.mulf %9, %13 : vector<256x128xf32>
    %c0_7 = arith.constant 0 : index
    %c0_8 = arith.constant 0 : index
    %15 = vector.load %arg5[%c0_7, %c0_8] : memref<1x128xf32, #tpu.memory_space<vmem>>, vector<1x128xf32>
    %16 = vector.shape_cast %15 : vector<1x128xf32> to vector<128xf32>
    %17 = vector.shape_cast %16 : vector<128xf32> to vector<1x128xf32>
    %18 = vector.broadcast %17 : vector<1x128xf32> to vector<256x128xf32>
    %19 = arith.addf %14, %18 : vector<256x128xf32>
    %20 = vector.shape_cast %19 : vector<256x128xf32> to vector<16x16x128xf32>
    %c0_9 = arith.constant 0 : index
    %c0_10 = arith.constant 0 : index
    %c0_11 = arith.constant 0 : index
    %c0_12 = arith.constant 0 : index
    %21 = vector.load %arg6[%c0_9, %c0_10, %c0_11, %c0_12] : memref<1x16x16x128xf32, #tpu.memory_space<vmem>>, vector<1x16x16x128xf32>
    %22 = vector.shape_cast %21 : vector<1x16x16x128xf32> to vector<16x16x128xf32>
    %23 = vector.shape_cast %20 : vector<16x16x128xf32> to vector<1x16x16x128xf32>
    tpu.vector_store %arg6[%c0_9, %c0_10, %c0_11, %c0_12], %23 {strides = array<i32>} : memref<1x16x16x128xf32, #tpu.memory_space<vmem>>, vector<1x16x16x128xf32>,
    return
  }
  func.func @transform_0(%arg0: i32, %arg1: i32) -> (i32, i32, i32, i32) {
    %c0_i32 = arith.constant 0 : i32
    %c0_i32_0 = arith.constant 0 : i32
    %c0_i32_1 = arith.constant 0 : i32
    %c0_i32_2 = arith.constant 0 : i32
    return %arg0, %c0_i32, %c0_i32_0, %c0_i32_1 : i32, i32, i32, i32
  }
  func.func @transform_1(%arg0: i32, %arg1: i32) -> (i32, i32, i32) {
    %c0_i32 = arith.constant 0 : i32
    %c0_i32_0 = arith.constant 0 : i32
    %c0_i32_1 = arith.constant 0 : i32
    %c0_i32_2 = arith.constant 0 : i32
    return %c0_i32, %c0_i32_0, %c0_i32_1 : i32, i32, i32
  }
  func.func @transform_2(%arg0: i32, %arg1: i32) -> (i32, i32) {
    %c0_i32 = arith.constant 0 : i32
    %c0_i32_0 = arith.constant 0 : i32
    %c0_i32_1 = arith.constant 0 : i32
    return %c0_i32, %c0_i32_0 : i32, i32
  }
  func.func @transform_3(%arg0: i32, %arg1: i32) -> (i32, i32) {
    %c0_i32 = arith.constant 0 : i32
    %c0_i32_0 = arith.constant 0 : i32
    %c0_i32_1 = arith.constant 0 : i32
    return %c0_i32, %c0_i32_0 : i32, i32
  }
  func.func @transform_4(%arg0: i32, %arg1: i32) -> (i32, i32, i32, i32) {
    %c0_i32 = arith.constant 0 : i32
    %c0_i32_0 = arith.constant 0 : i32
    %c0_i32_1 = arith.constant 0 : i32
    return %arg0, %arg1, %c0_i32, %c0_i32_0 : i32, i32, i32, i32
  }
}

</mosaic_0001>

<llo_original>
// kernel: tpu_custom_call.1
$region0: #{tpu_custom_call.1}
  #allocation0 [shape = 'u32[]', space=smem, size = 0x4, offset = 0x4, fixed_abs, tag = 'smem constant byte address 0x4 - core index']
  #allocation1 [shape = 'u32[144,128]{1,0:T(1,128)}', space=vmem, size = 0x12000, scoped, tag = 'internal scratch']
  %s0 = inlined_call_operand.vmem [shape: bf16[2,16,16,4], index: 0, kind: input, shape index: {}]
  %s1 = inlined_call_operand.vmem [shape: bf16[1,4,128], index: 1, kind: input, shape index: {}]
  %s2 = inlined_call_operand.vmem [shape: f32[1,128], index: 2, kind: input, shape index: {}]
  %s3 = inlined_call_operand.vmem [shape: f32[1,128], index: 3, kind: input, shape index: {}]
  %s4 = inlined_call_operand.hbm [shape: f32[2,16,16,128], index: 4, kind: output, shape index: {}]
  %s5 = sld [smem:[#allocation0]]
  $region49: #{tpu_custom_call.1} parent=0
    _
  %s7 = ssub.s32 1, %s5
  %s8 = scalar_select 0, %s7, %s5
  $region1: #{tpu_custom_call.1} parent=0
    #allocation2 [shape = 'u8[262144]{0}', space=vmem, size = 0x40000, scoped, tag = 'output window, operand 0']
    #allocation3 [shape = 's32[2]{0}', space=sflag, size = 0x8, scoped, tag = 'scoped memory for tpu_custom_call.1']
    %9 = vsyncpa [#allocation3], 0
    %s10 = scalar_lea.sflag [#allocation3], 1
    %11 = vsyncpa %s10, 0
    loop: start=0, step=1, limit=4
    $region2: #{tpu_custom_call.1} parent=1 // loop_pre_header
      _
    $region3: #{tpu_custom_call.1} parent=1 // loop_header
      %s13 = sphi 0, %s17
      %p14 = scmp.ge.s32.totalorder %s13, 4
      %s20 = sphi 0, %s32
      %s21 = sphi 0, %s28
      %s22 = sphi 0, %s20
      %s23 = sphi 0, %s21
      %s24 = sphi 0, %s22
      %s25 = sphi 0, %s23
      %s35 = sphi 0, %s37
      %s38 = sphi 0, %s35
      %s39 = sphi 0, %s38
      %s55 = sphi 0, %s39
      %s59 = sphi 0, %s59
      %s61 = sphi 0, %s59
      %s62 = sphi 0, %s61
      %s76 = sphi 0, %s62
      %s80 = sphi 0, %s80
      %s82 = sphi 0, %s80
      %s83 = sphi 0, %s82
      %s97 = sphi 0, %s83
      %s101 = sphi 0, %s101
      %s103 = sphi 0, %s101
      %s104 = sphi 0, %s103
      %s118 = sphi 0, %s104
      %s126 = sphi 0, %s128
      %s129 = sphi 0, %s126
      %s130 = sphi 0, %s129
      %s146 = sphi 0, %s130
    $region4: #{tpu_custom_call.1} parent=1 // loop_header_branch
      %16 = sbr.rel (%p14) target = $region8
    $region5: #{tpu_custom_call.1} parent=1 // loop_body
      %s18 = ssub.s32 %s13, 1
      %s19 = ssub.s32 %s13, 2
      %s26 = sadd.s32 1, %s21
      %p27 = scmp.ge.s32.totalorder %s26, 1
      %s28 = scalar_select %p27, 0, %s26
      %s29 = sadd.s32 1, %s20
      %s30 = scalar_select %p27, %s29, %s20
      %p31 = scmp.ge.s32.totalorder %s30, 2
      %s32 = scalar_select %p31, 0, %s30
      %s33 = ssub.s32 %s20, %s32
      %p34 = scmp.eq.s32.totalorder %s33, 0
      %s36 = sadd.s32 %s35, 1
      %s37 = scalar_select %p34, %s35, %s36
      %p40 = pneg %p34
      %p41 = scmp.eq.s32.totalorder %s13, 1
      %p42 = por %p40, %p41
      %p43 = scmp.ne.s32.totalorder %s35, %s38
      %p44 = scmp.eq.s32.totalorder %s13, 0
      %p45 = por %p43, %p44
      %p46 = scmp.ne.s32.totalorder %s35, %s38
      %p47 = scmp.eq.s32.totalorder %s18, 1
      %p48 = por %p46, %p47
      %p49 = scmp.ne.s32.totalorder %s38, %s39
      %p50 = scmp.eq.s32.totalorder %s18, 0
      %p51 = por %p49, %p50
      %p52 = scmp.ne.s32.totalorder %s38, %s39
      %p53 = scmp.eq.s32.totalorder %s19, 1
      %p54 = por %p52, %p53
      %p56 = scmp.ne.s32.totalorder %s39, %s55
      %p57 = scmp.eq.s32.totalorder %s19, 0
      %p58 = por %p56, %p57
      %s60 = sadd.s32 %s59, 1
      %p63 = scmp.eq.s32.totalorder %s13, 1
      %p64 = scmp.ne.s32.totalorder %s59, %s61
      %p65 = scmp.eq.s32.totalorder %s13, 0
      %p66 = por %p64, %p65
      %p67 = scmp.ne.s32.totalorder %s59, %s61
      %p68 = scmp.eq.s32.totalorder %s18, 1
      %p69 = por %p67, %p68
      %p70 = scmp.ne.s32.totalorder %s61, %s62
      %p71 = scmp.eq.s32.totalorder %s18, 0
      %p72 = por %p70, %p71
      %p73 = scmp.ne.s32.totalorder %s61, %s62
      %p74 = scmp.eq.s32.totalorder %s19, 1
      %p75 = por %p73, %p74
      %p77 = scmp.ne.s32.totalorder %s62, %s76
      %p78 = scmp.eq.s32.totalorder %s19, 0
      %p79 = por %p77, %p78
      %s81 = sadd.s32 %s80, 1
      %p84 = scmp.eq.s32.totalorder %s13, 1
      %p85 = scmp.ne.s32.totalorder %s80, %s82
      %p86 = scmp.eq.s32.totalorder %s13, 0
      %p87 = por %p85, %p86
      %p88 = scmp.ne.s32.totalorder %s80, %s82
      %p89 = scmp.eq.s32.totalorder %s18, 1
      %p90 = por %p88, %p89
      %p91 = scmp.ne.s32.totalorder %s82, %s83
      %p92 = scmp.eq.s32.totalorder %s18, 0
      %p93 = por %p91, %p92
      %p94 = scmp.ne.s32.totalorder %s82, %s83
      %p95 = scmp.eq.s32.totalorder %s19, 1
      %p96 = por %p94, %p95
      %p98 = scmp.ne.s32.totalorder %s83, %s97
      %p99 = scmp.eq.s32.totalorder %s19, 0
      %p100 = por %p98, %p99
      %s102 = sadd.s32 %s101, 1
      %p105 = scmp.eq.s32.totalorder %s13, 1
      %p106 = scmp.ne.s32.totalorder %s101, %s103
      %p107 = scmp.eq.s32.totalorder %s13, 0
      %p108 = por %p106, %p107
      %p109 = scmp.ne.s32.totalorder %s101, %s103
      %p110 = scmp.eq.s32.totalorder %s18, 1
      %p111 = por %p109, %p110
      %p112 = scmp.ne.s32.totalorder %s103, %s104
      %p113 = scmp.eq.s32.totalorder %s18, 0
      %p114 = por %p112, %p113
      %p115 = scmp.ne.s32.totalorder %s103, %s104
      %p116 = scmp.eq.s32.totalorder %s19, 1
      %p117 = por %p115, %p116
      %p119 = scmp.ne.s32.totalorder %s104, %s118
      %p120 = scmp.eq.s32.totalorder %s19, 0
      %p121 = por %p119, %p120
      %s122 = ssub.s32 %s20, %s32
      %s123 = ssub.s32 %s21, %s28
      %s124 = sor.u32 %s122, %s123
      %p125 = scmp.eq.s32.totalorder %s124, 0
      %s127 = sadd.s32 %s126, 1
      %s128 = scalar_select %p125, %s126, %s127
      %p131 = pneg %p125
      %p132 = scmp.eq.s32.totalorder %s13, 1
      %p133 = por %p131, %p132
      %p134 = scmp.ne.s32.totalorder %s126, %s129
      %p135 = scmp.eq.s32.totalorder %s13, 0
      %p136 = por %p134, %p135
      %p137 = scmp.ne.s32.totalorder %s126, %s129
      %p138 = scmp.eq.s32.totalorder %s18, 1
      %p139 = por %p137, %p138
      %p140 = scmp.ne.s32.totalorder %s129, %s130
      %p141 = scmp.eq.s32.totalorder %s18, 0
      %p142 = por %p140, %p141
      %p143 = scmp.ne.s32.totalorder %s129, %s130
      %p144 = scmp.eq.s32.totalorder %s19, 1
      %p145 = por %p143, %p144
      %p147 = scmp.ne.s32.totalorder %s130, %s146
      %p148 = scmp.eq.s32.totalorder %s19, 0
      %p149 = por %p147, %p148
      %p150 = scmp.le.s32.totalorder 1, %s13
      %p151 = scmp.lt.s32.totalorder %s13, 3
      %p152 = pnand %p150, %p151
      %p153 = pneg %p152
      // Predicated region
      $region9: #{tpu_custom_call.1} parent=5 // pred_check
        _
      $region10: #{tpu_custom_call.1} parent=5 // pred_check_branch
        %155 = sbr.rel (%p152) target = $region12
      $region11: #{tpu_custom_call.1} parent=5 // pred_region
        %s156 = ssub.s32 %s13, 1
        // Predicated region
        $region13: #{tpu_custom_call.1} parent=11 // pred_check
          %p157 = pneg %p51
        $region14: #{tpu_custom_call.1} parent=11 // pred_check_branch
          %159 = sbr.rel (%p157) target = $region16
        $region15: #{tpu_custom_call.1} parent=11 // pred_region
          %p160 = scmp.lt.s32.totalorder %s22, 1
          %s161 = scalar_select %p160, %s22, 1
          %s162 = smul.addr %s161, 32
          %s163 = smul.addr %s162, 4
          %s164 = scalar_lea.vmem %s0, %s163
        $region16: #{tpu_custom_call.1} parent=11 // pred_fallthru
          _
        // Predicated region
        $region17: #{tpu_custom_call.1} parent=11 // pred_check
          %p165 = pneg %p72
        $region18: #{tpu_custom_call.1} parent=11 // pred_check_branch
          %167 = sbr.rel (%p165) target = $region20
        $region19: #{tpu_custom_call.1} parent=11 // pred_region
          _
        $region20: #{tpu_custom_call.1} parent=11 // pred_fallthru
          _
        // Predicated region
        $region21: #{tpu_custom_call.1} parent=11 // pred_check
          %p168 = pneg %p93
        $region22: #{tpu_custom_call.1} parent=11 // pred_check_branch
          %170 = sbr.rel (%p168) target = $region24
        $region23: #{tpu_custom_call.1} parent=11 // pred_region
          _
        $region24: #{tpu_custom_call.1} parent=11 // pred_fallthru
          _
        // Predicated region
        $region25: #{tpu_custom_call.1} parent=11 // pred_check
          %p171 = pneg %p114
        $region26: #{tpu_custom_call.1} parent=11 // pred_check_branch
          %173 = sbr.rel (%p171) target = $region28
        $region27: #{tpu_custom_call.1} parent=11 // pred_region
          _
        $region28: #{tpu_custom_call.1} parent=11 // pred_fallthru
          _
      $region12: #{tpu_custom_call.1} parent=5 // pred_fallthru
        _
      %p174 = scmp.lt.s32.totalorder %s13, 2
      // Predicated region
      $region29: #{tpu_custom_call.1} parent=5 // pred_check
        %p175 = pneg %p174
      $region30: #{tpu_custom_call.1} parent=5 // pred_check_branch
        %177 = sbr.rel (%p175) target = $region32
      $region31: #{tpu_custom_call.1} parent=5 // pred_region
        _
      $region32: #{tpu_custom_call.1} parent=5 // pred_fallthru
        _
      %p178 = scmp.le.s32.totalorder 1, %s13
      %p179 = scmp.lt.s32.totalorder %s13, 3
      %p180 = pnand %p178, %p179
      %p181 = pneg %p180
      // Predicated region
      $region33: #{tpu_custom_call.1} parent=5 // pred_check
        _
      $region34: #{tpu_custom_call.1} parent=5 // pred_check_branch
        %183 = sbr.rel (%p180) target = $region36
      $region35: #{tpu_custom_call.1} parent=5 // pred_region
        %s184 = ssub.s32 %s13, 1
        %p185 = scmp.lt.s32.totalorder %s22, 1
        %s186 = scalar_select %p185, %s22, 1
        %s187 = smul.addr %s186, 32
        %s188 = smul.addr %s187, 4
        %s189 = scalar_lea.vmem %s0, %s188
        %p190 = pneg %p51
        %p191 = pneg %p48
        %p192 = pneg %p72
        %p193 = pneg %p69
        %p194 = pneg %p93
        %p195 = pneg %p90
        %p196 = pneg %p114
        %p197 = pneg %p111
        %p198 = pneg %p142
        %p199 = pneg %p139
        %s200 = sand.u32 %s129, 1
        %s201 = scalar_lea.sflag [#allocation3], %s200
        %s202 = sand.u32 %s129, 1
        %s203 = smul.addr %s202, 256
        %s204 = scalar_lea.vmem [#allocation2], %s203
        %p205 = scmp.lt.s32.totalorder %s22, 1
        %s206 = scalar_select %p205, %s22, 1
        %s207 = smul.addr %s206, 32
        %s208 = smul.addr %s207, 4
        %s209 = scalar_lea.vmem %s0, %s208
        %s210 = smul.u32 16, %s23
        %s212 = smul.u32 %s23, 16
        %s213 = smul.u32 %s212, 2
        %s214 = smul.addr %s213, 4
        %s215 = scalar_lea.vmem %s209, %s214
        %v216 = vld [vmem:[%s215] sm:$0xf]
        %v217 = vld [vmem:[%s215 + $0x4] sm:$0xf]
        %v218 = vld [vmem:[%s215 + $0x8] sm:$0xf]
        %v219 = vld [vmem:[%s215 + $0xc] sm:$0xf]
        %v220 = vld [vmem:[%s215 + $0x10] sm:$0xf]
        %v221 = vld [vmem:[%s215 + $0x14] sm:$0xf]
        %v222 = vld [vmem:[%s215 + $0x18] sm:$0xf]
        %v223 = vld [vmem:[%s215 + $0x1c] sm:$0xf]
        %v224 = vld [vmem:[%s215 + $0x20] sm:$0xf]
        %v225 = vld [vmem:[%s215 + $0x24] sm:$0xf]
        %v226 = vld [vmem:[%s215 + $0x28] sm:$0xf]
        %v227 = vld [vmem:[%s215 + $0x2c] sm:$0xf]
        %v228 = vld [vmem:[%s215 + $0x30] sm:$0xf]
        %v229 = vld [vmem:[%s215 + $0x34] sm:$0xf]
        %v230 = vld [vmem:[%s215 + $0x38] sm:$0xf]
        %v231 = vld [vmem:[%s215 + $0x3c] sm:$0xf]
        %v232 = vld [vmem:[%s215 + $0x40] sm:$0xf]
        %v233 = vld [vmem:[%s215 + $0x44] sm:$0xf]
        %v234 = vld [vmem:[%s215 + $0x48] sm:$0xf]
        %v235 = vld [vmem:[%s215 + $0x4c] sm:$0xf]
        %v236 = vld [vmem:[%s215 + $0x50] sm:$0xf]
        %v237 = vld [vmem:[%s215 + $0x54] sm:$0xf]
        %v238 = vld [vmem:[%s215 + $0x58] sm:$0xf]
        %v239 = vld [vmem:[%s215 + $0x5c] sm:$0xf]
        %v240 = vld [vmem:[%s215 + $0x60] sm:$0xf]
        %v241 = vld [vmem:[%s215 + $0x64] sm:$0xf]
        %v242 = vld [vmem:[%s215 + $0x68] sm:$0xf]
        %v243 = vld [vmem:[%s215 + $0x6c] sm:$0xf]
        %v244 = vld [vmem:[%s215 + $0x70] sm:$0xf]
        %v245 = vld [vmem:[%s215 + $0x74] sm:$0xf]
        %v246 = vld [vmem:[%s215 + $0x78] sm:$0xf]
        %v247 = vld [vmem:[%s215 + $0x7c] sm:$0xf]
        %v248 = vld [vmem:[%s1] sm:$0x3]
        %v281 = vunpack.c.l.b16 %v216
        %v282 = vunpack.c.l.b16 %v217
        %v283 = vunpack.c.l.b16 %v218
        %v284 = vunpack.c.l.b16 %v219
        %v285 = vunpack.c.l.b16 %v220
        %v286 = vunpack.c.l.b16 %v221
        %v287 = vunpack.c.l.b16 %v222
        %v288 = vunpack.c.l.b16 %v223
        %v289 = vunpack.c.l.b16 %v224
        %v290 = vunpack.c.l.b16 %v225
        %v291 = vunpack.c.l.b16 %v226
        %v292 = vunpack.c.l.b16 %v227
        %v293 = vunpack.c.l.b16 %v228
        %v294 = vunpack.c.l.b16 %v229
        %v295 = vunpack.c.l.b16 %v230
        %v296 = vunpack.c.l.b16 %v231
        %v297 = vunpack.c.l.b16 %v232
        %v298 = vunpack.c.l.b16 %v233
        %v299 = vunpack.c.l.b16 %v234
        %v300 = vunpack.c.l.b16 %v235
        %v301 = vunpack.c.l.b16 %v236
        %v302 = vunpack.c.l.b16 %v237
        %v303 = vunpack.c.l.b16 %v238
        %v304 = vunpack.c.l.b16 %v239
        %v305 = vunpack.c.l.b16 %v240
        %v306 = vunpack.c.l.b16 %v241
        %v307 = vunpack.c.l.b16 %v242
        %v308 = vunpack.c.l.b16 %v243
        %v309 = vunpack.c.l.b16 %v244
        %v310 = vunpack.c.l.b16 %v245
        %v311 = vunpack.c.l.b16 %v246
        %v312 = vunpack.c.l.b16 %v247
        %v313 = vpack.c.b16 %v282, %v281
        %v314 = vpack.c.b16 %v284, %v283
        %v315 = vpack.c.b16 %v286, %v285
        %v316 = vpack.c.b16 %v288, %v287
        %v317 = vpack.c.b16 %v290, %v289
        %v318 = vpack.c.b16 %v292, %v291
        %v319 = vpack.c.b16 %v294, %v293
        %v320 = vpack.c.b16 %v296, %v295
        %v321 = vpack.c.b16 %v298, %v297
        %v322 = vpack.c.b16 %v300, %v299
        %v323 = vpack.c.b16 %v302, %v301
        %v324 = vpack.c.b16 %v304, %v303
        %v325 = vpack.c.b16 %v306, %v305
        %v326 = vpack.c.b16 %v308, %v307
        %v327 = vpack.c.b16 %v310, %v309
        %v328 = vpack.c.b16 %v312, %v311
        %vm329 = vcmask 31744
        %v331 = vsel %vm329, %v313, 0
        %v334 = vsel %vm329, %v314, 0
        %v337 = vsel %vm329, %v315, 0
        %v340 = vsel %vm329, %v316, 0
        %v343 = vsel %vm329, %v317, 0
        %v346 = vsel %vm329, %v318, 0
        %v349 = vsel %vm329, %v319, 0
        %v352 = vsel %vm329, %v320, 0
        %v355 = vsel %vm329, %v321, 0
        %v358 = vsel %vm329, %v322, 0
        %v361 = vsel %vm329, %v323, 0
        %v364 = vsel %vm329, %v324, 0
        %v367 = vsel %vm329, %v325, 0
        %v370 = vsel %vm329, %v326, 0
        %v373 = vsel %vm329, %v327, 0
        %v376 = vsel %vm329, %v328, 0
        %vm378 = vcmask 1041408
        %v380 = vsel %vm378, %v248, 0
        %382 = vmatprep.subr.bf16.mxu0 0
        %383 = vmatpush1.bf16.msra.mxu0 %v380
        %384 = vmatprep.subr.bf16.mxu0 0
        %385 = vmatpush1.bf16.msra.mxu0 0
        %386 = vmatprep.subr.bf16.mxu0 0
        %387 = vmatpush1.bf16.msra.mxu0 0
        %388 = vmatprep.subr.bf16.mxu0 0
        %389 = vmatpush1.bf16.msra.mxu0 0
        %390 = vmatprep.subr.bf16.mxu0 0
        %391 = vmatpush1.bf16.msra.mxu0 0
        %392 = vmatprep.subr.bf16.mxu0 0
        %393 = vmatpush1.bf16.msra.mxu0 0
        %394 = vmatprep.subr.bf16.mxu0 0
        %395 = vmatpush1.bf16.msra.mxu0 0
        %396 = vmatprep.subr.bf16.mxu0 0
        %397 = vmatpush1.bf16.msra.mxu0 0
        %398 = vmatprep.subr.bf16.mxu0 0
        %399 = vmatpush1.bf16.msra.mxu0 0
        %400 = vmatprep.subr.bf16.mxu0 0
        %401 = vmatpush1.bf16.msra.mxu0 0
        %402 = vmatprep.subr.bf16.mxu0 0
        %403 = vmatpush1.bf16.msra.mxu0 0
        %404 = vmatprep.subr.bf16.mxu0 0
        %405 = vmatpush1.bf16.msra.mxu0 0
        %406 = vmatprep.subr.bf16.mxu0 0
        %407 = vmatpush1.bf16.msra.mxu0 0
        %408 = vmatprep.subr.bf16.mxu0 0
        %409 = vmatpush1.bf16.msra.mxu0 0
        %410 = vmatprep.subr.bf16.mxu0 0
        %411 = vmatpush1.bf16.msra.mxu0 0
        %412 = vmatprep.subr.bf16.mxu0 0
        %413 = vmatpush1.bf16.msra.mxu0 0
        %414 = vmatprep.mubr.bf16.mxu0 0
        %415 = vmatmul.mubr.bf16.gmra.mrb[0].mxu0 %v331
        %v416 = vpop.f32.mrb[0].mxu0
        %v417 = vadd.f32 0.0, %v416
        %v418 = vpop.f32.mrb[0].mxu0
        %v419 = vpop.f32.mrb[0].mxu0
        %v420 = vadd.f32 0.0, %v419
        %v421 = vpop.f32.mrb[0].mxu0
        %422 = vmatprep.mubr.bf16.mxu0 0
        %423 = vmatmul.mubr.bf16.gmra.mrb[0].mxu0 %v334
        %v424 = vpop.f32.mrb[0].mxu0
        %v425 = vadd.f32 0.0, %v424
        %v426 = vpop.f32.mrb[0].mxu0
        %v427 = vpop.f32.mrb[0].mxu0
        %v428 = vadd.f32 0.0, %v427
        %v429 = vpop.f32.mrb[0].mxu0
        %430 = vmatprep.mubr.bf16.mxu0 0
        %431 = vmatmul.mubr.bf16.gmra.mrb[0].mxu0 %v337
        %v432 = vpop.f32.mrb[0].mxu0
        %v433 = vadd.f32 0.0, %v432
        %v434 = vpop.f32.mrb[0].mxu0
        %v435 = vpop.f32.mrb[0].mxu0
        %v436 = vadd.f32 0.0, %v435
        %v437 = vpop.f32.mrb[0].mxu0
        %438 = vmatprep.mubr.bf16.mxu0 0
        %439 = vmatmul.mubr.bf16.gmra.mrb[0].mxu0 %v340
        %v440 = vpop.f32.mrb[0].mxu0
        %v441 = vadd.f32 0.0, %v440
        %v442 = vpop.f32.mrb[0].mxu0
        %v443 = vpop.f32.mrb[0].mxu0
        %v444 = vadd.f32 0.0, %v443
        %v445 = vpop.f32.mrb[0].mxu0
        %446 = vmatprep.mubr.bf16.mxu0 0
        %447 = vmatmul.mubr.bf16.gmra.mrb[0].mxu0 %v343
        %v448 = vpop.f32.mrb[0].mxu0
        %v449 = vadd.f32 0.0, %v448
        %v450 = vpop.f32.mrb[0].mxu0
        %v451 = vpop.f32.mrb[0].mxu0
        %v452 = vadd.f32 0.0, %v451
        %v453 = vpop.f32.mrb[0].mxu0
        %454 = vmatprep.mubr.bf16.mxu0 0
        %455 = vmatmul.mubr.bf16.gmra.mrb[0].mxu0 %v346
        %v456 = vpop.f32.mrb[0].mxu0
        %v457 = vadd.f32 0.0, %v456
        %v458 = vpop.f32.mrb[0].mxu0
        %v459 = vpop.f32.mrb[0].mxu0
        %v460 = vadd.f32 0.0, %v459
        %v461 = vpop.f32.mrb[0].mxu0
        %462 = vmatprep.mubr.bf16.mxu0 0
        %463 = vmatmul.mubr.bf16.gmra.mrb[0].mxu0 %v349
        %v464 = vpop.f32.mrb[0].mxu0
        %v465 = vadd.f32 0.0, %v464
        %v466 = vpop.f32.mrb[0].mxu0
        %v467 = vpop.f32.mrb[0].mxu0
        %v468 = vadd.f32 0.0, %v467
        %v469 = vpop.f32.mrb[0].mxu0
        %470 = vmatprep.mubr.bf16.mxu0 0
        %471 = vmatmul.mubr.bf16.gmra.mrb[0].mxu0 %v352
        %v472 = vpop.f32.mrb[0].mxu0
        %v473 = vadd.f32 0.0, %v472
        %v474 = vpop.f32.mrb[0].mxu0
        %v475 = vpop.f32.mrb[0].mxu0
        %v476 = vadd.f32 0.0, %v475
        %v477 = vpop.f32.mrb[0].mxu0
        %478 = vmatprep.mubr.bf16.mxu0 0
        %479 = vmatmul.mubr.bf16.gmra.mrb[0].mxu0 %v355
        %v480 = vpop.f32.mrb[0].mxu0
        %v481 = vadd.f32 0.0, %v480
        %v482 = vpop.f32.mrb[0].mxu0
        %v483 = vpop.f32.mrb[0].mxu0
        %v484 = vadd.f32 0.0, %v483
        %v485 = vpop.f32.mrb[0].mxu0
        %486 = vmatprep.mubr.bf16.mxu0 0
        %487 = vmatmul.mubr.bf16.gmra.mrb[0].mxu0 %v358
        %v488 = vpop.f32.mrb[0].mxu0
        %v489 = vadd.f32 0.0, %v488
        %v490 = vpop.f32.mrb[0].mxu0
        %v491 = vpop.f32.mrb[0].mxu0
        %v492 = vadd.f32 0.0, %v491
        %v493 = vpop.f32.mrb[0].mxu0
        %494 = vmatprep.mubr.bf16.mxu0 0
        %495 = vmatmul.mubr.bf16.gmra.mrb[0].mxu0 %v361
        %v496 = vpop.f32.mrb[0].mxu0
        %v497 = vadd.f32 0.0, %v496
        %v498 = vpop.f32.mrb[0].mxu0
        %v499 = vpop.f32.mrb[0].mxu0
        %v500 = vadd.f32 0.0, %v499
        %v501 = vpop.f32.mrb[0].mxu0
        %502 = vmatprep.mubr.bf16.mxu0 0
        %503 = vmatmul.mubr.bf16.gmra.mrb[0].mxu0 %v364
        %v504 = vpop.f32.mrb[0].mxu0
        %v505 = vadd.f32 0.0, %v504
        %v506 = vpop.f32.mrb[0].mxu0
        %v507 = vpop.f32.mrb[0].mxu0
        %v508 = vadd.f32 0.0, %v507
        %v509 = vpop.f32.mrb[0].mxu0
        %510 = vmatprep.mubr.bf16.mxu0 0
        %511 = vmatmul.mubr.bf16.gmra.mrb[0].mxu0 %v367
        %v512 = vpop.f32.mrb[0].mxu0
        %v513 = vadd.f32 0.0, %v512
        %v514 = vpop.f32.mrb[0].mxu0
        %v515 = vpop.f32.mrb[0].mxu0
        %v516 = vadd.f32 0.0, %v515
        %v517 = vpop.f32.mrb[0].mxu0
        %518 = vmatprep.mubr.bf16.mxu0 0
        %519 = vmatmul.mubr.bf16.gmra.mrb[0].mxu0 %v370
        %v520 = vpop.f32.mrb[0].mxu0
        %v521 = vadd.f32 0.0, %v520
        %v522 = vpop.f32.mrb[0].mxu0
        %v523 = vpop.f32.mrb[0].mxu0
        %v524 = vadd.f32 0.0, %v523
        %v525 = vpop.f32.mrb[0].mxu0
        %526 = vmatprep.mubr.bf16.mxu0 0
        %527 = vmatmul.mubr.bf16.gmra.mrb[0].mxu0 %v373
        %v528 = vpop.f32.mrb[0].mxu0
        %v529 = vadd.f32 0.0, %v528
        %v530 = vpop.f32.mrb[0].mxu0
        %v531 = vpop.f32.mrb[0].mxu0
        %v532 = vadd.f32 0.0, %v531
        %v533 = vpop.f32.mrb[0].mxu0
        %534 = vmatprep.mubr.bf16.mxu0 0
        %535 = vmatmul.mubr.bf16.gmra.mrb[0].mxu0 %v376
        %v536 = vpop.f32.mrb[0].mxu0
        %v537 = vadd.f32 0.0, %v536
        %v538 = vpop.f32.mrb[0].mxu0
        %v539 = vpop.f32.mrb[0].mxu0
        %v540 = vadd.f32 0.0, %v539
        %v541 = vpop.f32.mrb[0].mxu0
        %542 = vdwg.mxu0
        %v543 = vld [vmem:[%s2] sm:$0x1]
        %v545 = vlaneseq
        %v546 = vshrl.u32 %v545, 7
        %v547 = vsub.s32 0, %v546
        %v548 = vrot.slane %v543, %v547
        %v550 = vmul.f32 %v417, %v548
        %v551 = vmul.f32 %v420, %v548
        %v552 = vmul.f32 %v425, %v548
        %v553 = vmul.f32 %v428, %v548
        %v554 = vmul.f32 %v433, %v548
        %v555 = vmul.f32 %v436, %v548
        %v556 = vmul.f32 %v441, %v548
        %v557 = vmul.f32 %v444, %v548
        %v558 = vmul.f32 %v449, %v548
        %v559 = vmul.f32 %v452, %v548
        %v560 = vmul.f32 %v457, %v548
        %v561 = vmul.f32 %v460, %v548
        %v562 = vmul.f32 %v465, %v548
        %v563 = vmul.f32 %v468, %v548
        %v564 = vmul.f32 %v473, %v548
        %v565 = vmul.f32 %v476, %v548
        %v566 = vmul.f32 %v481, %v548
        %v567 = vmul.f32 %v484, %v548
        %v568 = vmul.f32 %v489, %v548
        %v569 = vmul.f32 %v492, %v548
        %v570 = vmul.f32 %v497, %v548
        %v571 = vmul.f32 %v500, %v548
        %v572 = vmul.f32 %v505, %v548
        %v573 = vmul.f32 %v508, %v548
        %v574 = vmul.f32 %v513, %v548
        %v575 = vmul.f32 %v516, %v548
        %v576 = vmul.f32 %v521, %v548
        %v577 = vmul.f32 %v524, %v548
        %v578 = vmul.f32 %v529, %v548
        %v579 = vmul.f32 %v532, %v548
        %v580 = vmul.f32 %v537, %v548
        %v581 = vmul.f32 %v540, %v548
        %v582 = vld [vmem:[%s3] sm:$0x1]
        %v584 = vlaneseq
        %v585 = vshrl.u32 %v584, 7
        %v586 = vsub.s32 0, %v585
        %v587 = vrot.slane %v582, %v586
        %v589 = vadd.f32 %v550, %v587
        %v590 = vadd.f32 %v551, %v587
        %v591 = vadd.f32 %v552, %v587
        %v592 = vadd.f32 %v553, %v587
        %v593 = vadd.f32 %v554, %v587
        %v594 = vadd.f32 %v555, %v587
        %v595 = vadd.f32 %v556, %v587
        %v596 = vadd.f32 %v557, %v587
        %v597 = vadd.f32 %v558, %v587
        %v598 = vadd.f32 %v559, %v587
        %v599 = vadd.f32 %v560, %v587
        %v600 = vadd.f32 %v561, %v587
        %v601 = vadd.f32 %v562, %v587
        %v602 = vadd.f32 %v563, %v587
        %v603 = vadd.f32 %v564, %v587
        %v604 = vadd.f32 %v565, %v587
        %v605 = vadd.f32 %v566, %v587
        %v606 = vadd.f32 %v567, %v587
        %v607 = vadd.f32 %v568, %v587
        %v608 = vadd.f32 %v569, %v587
        %v609 = vadd.f32 %v570, %v587
        %v610 = vadd.f32 %v571, %v587
        %v611 = vadd.f32 %v572, %v587
        %v612 = vadd.f32 %v573, %v587
        %v613 = vadd.f32 %v574, %v587
        %v614 = vadd.f32 %v575, %v587
        %v615 = vadd.f32 %v576, %v587
        %v616 = vadd.f32 %v577, %v587
        %v617 = vadd.f32 %v578, %v587
        %v618 = vadd.f32 %v579, %v587
        %v619 = vadd.f32 %v580, %v587
        %v620 = vadd.f32 %v581, %v587
        %621 = vst [vmem:[%s204] sm:$0xff] %v589
        %622 = vst [vmem:[%s204 + $0x8] sm:$0xff] %v590
        %623 = vst [vmem:[%s204 + $0x10] sm:$0xff] %v591
        %624 = vst [vmem:[%s204 + $0x18] sm:$0xff] %v592
        %625 = vst [vmem:[%s204 + $0x20] sm:$0xff] %v593
        %626 = vst [vmem:[%s204 + $0x28] sm:$0xff] %v594
        %627 = vst [vmem:[%s204 + $0x30] sm:$0xff] %v595
        %628 = vst [vmem:[%s204 + $0x38] sm:$0xff] %v596
        %629 = vst [vmem:[%s204 + $0x40] sm:$0xff] %v597
        %630 = vst [vmem:[%s204 + $0x48] sm:$0xff] %v598
        %631 = vst [vmem:[%s204 + $0x50] sm:$0xff] %v599
        %632 = vst [vmem:[%s204 + $0x58] sm:$0xff] %v600
        %633 = vst [vmem:[%s204 + $0x60] sm:$0xff] %v601
        %634 = vst [vmem:[%s204 + $0x68] sm:$0xff] %v602
        %635 = vst [vmem:[%s204 + $0x70] sm:$0xff] %v603
        %636 = vst [vmem:[%s204 + $0x78] sm:$0xff] %v604
        %637 = vst [vmem:[%s204 + $0x80] sm:$0xff] %v605
        %638 = vst [vmem:[%s204 + $0x88] sm:$0xff] %v606
        %639 = vst [vmem:[%s204 + $0x90] sm:$0xff] %v607
        %640 = vst [vmem:[%s204 + $0x98] sm:$0xff] %v608
        %641 = vst [vmem:[%s204 + $0xa0] sm:$0xff] %v609
        %642 = vst [vmem:[%s204 + $0xa8] sm:$0xff] %v610
        %643 = vst [vmem:[%s204 + $0xb0] sm:$0xff] %v611
        %644 = vst [vmem:[%s204 + $0xb8] sm:$0xff] %v612
        %645 = vst [vmem:[%s204 + $0xc0] sm:$0xff] %v613
        %646 = vst [vmem:[%s204 + $0xc8] sm:$0xff] %v614
        %647 = vst [vmem:[%s204 + $0xd0] sm:$0xff] %v615
        %648 = vst [vmem:[%s204 + $0xd8] sm:$0xff] %v616
        %649 = vst [vmem:[%s204 + $0xe0] sm:$0xff] %v617
        %650 = vst [vmem:[%s204 + $0xe8] sm:$0xff] %v618
        %651 = vst [vmem:[%s204 + $0xf0] sm:$0xff] %v619
        %652 = vst [vmem:[%s204 + $0xf8] sm:$0xff] %v620
        %s653 = sand.u32 %s129, 1
        %s654 = scalar_lea.sflag [#allocation3], %s653
        %s655 = sand.u32 %s129, 1
        %s656 = smul.addr %s655, 256
        %s657 = scalar_lea.vmem [#allocation2], %s656
        // Predicated region
        $region37: #{tpu_custom_call.1} parent=35 // pred_check
          %p658 = pneg %p139
        $region38: #{tpu_custom_call.1} parent=35 // pred_check_branch
          %660 = sbr.rel (%p658) target = $region40
        $region39: #{tpu_custom_call.1} parent=35 // pred_region
          %s661 = smul.u32 16, %s23
          %s663 = ssub.s32 4096, 4096
          %664 = vsyncadd %s654, %s663
          %s665 = smul.addr %s661, 2
          %s666 = smul.addr %s22, 32
          %s667 = sadd.s32 %s665, %s666
          %s668 = smul.addr %s667, 128
          %s669 = scalar_lea.hbm %s4, %s668
          %s670 = sshll.u32 %s657, 4
          %s671 = int_to_ptr.vmem [resolvable:$true] %s670
          %676 = dma.vmem_to_hbm [thread:$0]  %s671, 4096, %s669, %s654, 128, 128, 8
        $region40: #{tpu_custom_call.1} parent=35 // pred_fallthru
          _
      $region36: #{tpu_custom_call.1} parent=5 // pred_fallthru
        _
      %p677 = scmp.le.s32.totalorder 2, %s13
      // Predicated region
      $region41: #{tpu_custom_call.1} parent=5 // pred_check
        %p678 = pneg %p677
      $region42: #{tpu_custom_call.1} parent=5 // pred_check_branch
        %680 = sbr.rel (%p678) target = $region44
      $region43: #{tpu_custom_call.1} parent=5 // pred_region
        %s681 = ssub.s32 %s13, 2
        // Predicated region
        $region45: #{tpu_custom_call.1} parent=43 // pred_check
          %p682 = pneg %p145
        $region46: #{tpu_custom_call.1} parent=43 // pred_check_branch
          %684 = sbr.rel (%p682) target = $region48
        $region47: #{tpu_custom_call.1} parent=43 // pred_region
          %s685 = sand.u32 %s130, 1
          %s686 = scalar_lea.sflag [#allocation3], %s685
          %s687 = sand.u32 %s130, 1
          %s688 = smul.addr %s687, 256
          %s689 = scalar_lea.vmem [#allocation2], %s688
          %690 = dma.done %s686, 4096
        $region48: #{tpu_custom_call.1} parent=43 // pred_fallthru
          _
      $region44: #{tpu_custom_call.1} parent=5 // pred_fallthru
        _
    $region6: #{tpu_custom_call.1} parent=1 // loop_footer
      %s17 = sadd.s32 1, %s13
    $region7: #{tpu_custom_call.1} parent=1 // loop_footer_branch
      %12 = sbr.rel target = $region3
    $region8: #{tpu_custom_call.1} parent=1 // loop_exit
      _
    %691 = vsyncpa [#allocation3], 1
    %s692 = scalar_lea.sflag [#allocation3], 1
    %693 = vsyncpa %s692, 1

// kernel: tpu_custom_call.1
$region0: #{tpu_custom_call.1}
  #allocation0 [shape = 'u32[]', space=smem, size = 0x4, offset = 0x4, fixed_abs, tag = 'smem constant byte address 0x4 - core index']
  #allocation1 [shape = 'u32[144,128]{1,0:T(1,128)}', space=vmem, size = 0x12000, scoped, tag = 'internal scratch']
  %s0 = inlined_call_operand.vmem [shape: bf16[2,16,16,4], index: 0, kind: input, shape index: {}]
  %s1 = inlined_call_operand.vmem [shape: bf16[1,4,128], index: 1, kind: input, shape index: {}]
  %s2 = inlined_call_operand.vmem [shape: f32[1,128], index: 2, kind: input, shape index: {}]
  %s3 = inlined_call_operand.vmem [shape: f32[1,128], index: 3, kind: input, shape index: {}]
  %s4 = inlined_call_operand.hbm [shape: f32[2,16,16,128], index: 4, kind: output, shape index: {}]
  %s5 = sld [smem:[#allocation0]]
  $region49: #{tpu_custom_call.1} parent=0
    _
  %s7 = ssub.s32 1, %s5
  %s8 = scalar_select 0, %s7, %s5
  $region1: #{tpu_custom_call.1} parent=0
    #allocation2 [shape = 'u8[262144]{0}', space=vmem, size = 0x40000, scoped, tag = 'output window, operand 0']
    #allocation3 [shape = 's32[2]{0}', space=sflag, size = 0x8, scoped, tag = 'scoped memory for tpu_custom_call.1']
    %9 = vsyncpa [#allocation3], 0
    %s10 = scalar_lea.sflag [#allocation3], 1
    %11 = vsyncpa %s10, 0
    loop: start=0, step=1, limit=4
    $region2: #{tpu_custom_call.1} parent=1 // loop_pre_header
      _
    $region3: #{tpu_custom_call.1} parent=1 // loop_header
      %s13 = sphi 0, %s17
      %p14 = scmp.ge.s32.totalorder %s13, 4
      %s20 = sphi 0, %s32
      %s21 = sphi 0, %s28
      %s22 = sphi 0, %s20
      %s23 = sphi 0, %s21
      %s24 = sphi 0, %s22
      %s25 = sphi 0, %s23
      %s35 = sphi 0, %s37
      %s38 = sphi 0, %s35
      %s39 = sphi 0, %s38
      %s55 = sphi 0, %s39
      %s59 = sphi 0, %s59
      %s61 = sphi 0, %s59
      %s62 = sphi 0, %s61
      %s76 = sphi 0, %s62
      %s80 = sphi 0, %s80
      %s82 = sphi 0, %s80
      %s83 = sphi 0, %s82
      %s97 = sphi 0, %s83
      %s101 = sphi 0, %s101
      %s103 = sphi 0, %s101
      %s104 = sphi 0, %s103
      %s118 = sphi 0, %s104
      %s126 = sphi 0, %s128
      %s129 = sphi 0, %s126
      %s130 = sphi 0, %s129
      %s146 = sphi 0, %s130
    $region4: #{tpu_custom_call.1} parent=1 // loop_header_branch
      %16 = sbr.rel (%p14) target = $region8
    $region5: #{tpu_custom_call.1} parent=1 // loop_body
      %s18 = ssub.s32 %s13, 1
      %s19 = ssub.s32 %s13, 2
      %s26 = sadd.s32 1, %s21
      %p27 = scmp.ge.s32.totalorder %s26, 1
      %s28 = scalar_select %p27, 0, %s26
      %s29 = sadd.s32 1, %s20
      %s30 = scalar_select %p27, %s29, %s20
      %p31 = scmp.ge.s32.totalorder %s30, 2
      %s32 = scalar_select %p31, 0, %s30
      %s33 = ssub.s32 %s20, %s32
      %p34 = scmp.eq.s32.totalorder %s33, 0
      %s36 = sadd.s32 %s35, 1
      %s37 = scalar_select %p34, %s35, %s36
      %p40 = pneg %p34
      %p41 = scmp.eq.s32.totalorder %s13, 1
      %p42 = por %p40, %p41
      %p43 = scmp.ne.s32.totalorder %s35, %s38
      %p44 = scmp.eq.s32.totalorder %s13, 0
      %p45 = por %p43, %p44
      %p46 = scmp.ne.s32.totalorder %s35, %s38
      %p47 = scmp.eq.s32.totalorder %s18, 1
      %p48 = por %p46, %p47
      %p49 = scmp.ne.s32.totalorder %s38, %s39
      %p50 = scmp.eq.s32.totalorder %s18, 0
      %p51 = por %p49, %p50
      %p52 = scmp.ne.s32.totalorder %s38, %s39
      %p53 = scmp.eq.s32.totalorder %s19, 1
      %p54 = por %p52, %p53
      %p56 = scmp.ne.s32.totalorder %s39, %s55
      %p57 = scmp.eq.s32.totalorder %s19, 0
      %p58 = por %p56, %p57
      %s60 = sadd.s32 %s59, 1
      %p63 = scmp.eq.s32.totalorder %s13, 1
      %p64 = scmp.ne.s32.totalorder %s59, %s61
      %p65 = scmp.eq.s32.totalorder %s13, 0
      %p66 = por %p64, %p65
      %p67 = scmp.ne.s32.totalorder %s59, %s61
      %p68 = scmp.eq.s32.totalorder %s18, 1
      %p69 = por %p67, %p68
      %p70 = scmp.ne.s32.totalorder %s61, %s62
      %p71 = scmp.eq.s32.totalorder %s18, 0
      %p72 = por %p70, %p71
      %p73 = scmp.ne.s32.totalorder %s61, %s62
      %p74 = scmp.eq.s32.totalorder %s19, 1
      %p75 = por %p73, %p74
      %p77 = scmp.ne.s32.totalorder %s62, %s76
      %p78 = scmp.eq.s32.totalorder %s19, 0
      %p79 = por %p77, %p78
      %s81 = sadd.s32 %s80, 1
      %p84 = scmp.eq.s32.totalorder %s13, 1
      %p85 = scmp.ne.s32.totalorder %s80, %s82
      %p86 = scmp.eq.s32.totalorder %s13, 0
      %p87 = por %p85, %p86
      %p88 = scmp.ne.s32.totalorder %s80, %s82
      %p89 = scmp.eq.s32.totalorder %s18, 1
      %p90 = por %p88, %p89
      %p91 = scmp.ne.s32.totalorder %s82, %s83
      %p92 = scmp.eq.s32.totalorder %s18, 0
      %p93 = por %p91, %p92
      %p94 = scmp.ne.s32.totalorder %s82, %s83
      %p95 = scmp.eq.s32.totalorder %s19, 1
      %p96 = por %p94, %p95
      %p98 = scmp.ne.s32.totalorder %s83, %s97
      %p99 = scmp.eq.s32.totalorder %s19, 0
      %p100 = por %p98, %p99
      %s102 = sadd.s32 %s101, 1
      %p105 = scmp.eq.s32.totalorder %s13, 1
      %p106 = scmp.ne.s32.totalorder %s101, %s103
      %p107 = scmp.eq.s32.totalorder %s13, 0
      %p108 = por %p106, %p107
      %p109 = scmp.ne.s32.totalorder %s101, %s103
      %p110 = scmp.eq.s32.totalorder %s18, 1
      %p111 = por %p109, %p110
      %p112 = scmp.ne.s32.totalorder %s103, %s104
      %p113 = scmp.eq.s32.totalorder %s18, 0
      %p114 = por %p112, %p113
      %p115 = scmp.ne.s32.totalorder %s103, %s104
      %p116 = scmp.eq.s32.totalorder %s19, 1
      %p117 = por %p115, %p116
      %p119 = scmp.ne.s32.totalorder %s104, %s118
      %p120 = scmp.eq.s32.totalorder %s19, 0
      %p121 = por %p119, %p120
      %s122 = ssub.s32 %s20, %s32
      %s123 = ssub.s32 %s21, %s28
      %s124 = sor.u32 %s122, %s123
      %p125 = scmp.eq.s32.totalorder %s124, 0
      %s127 = sadd.s32 %s126, 1
      %s128 = scalar_select %p125, %s126, %s127
      %p131 = pneg %p125
      %p132 = scmp.eq.s32.totalorder %s13, 1
      %p133 = por %p131, %p132
      %p134 = scmp.ne.s32.totalorder %s126, %s129
      %p135 = scmp.eq.s32.totalorder %s13, 0
      %p136 = por %p134, %p135
      %p137 = scmp.ne.s32.totalorder %s126, %s129
      %p138 = scmp.eq.s32.totalorder %s18, 1
      %p139 = por %p137, %p138
      %p140 = scmp.ne.s32.totalorder %s129, %s130
      %p141 = scmp.eq.s32.totalorder %s18, 0
      %p142 = por %p140, %p141
      %p143 = scmp.ne.s32.totalorder %s129, %s130
      %p144 = scmp.eq.s32.totalorder %s19, 1
      %p145 = por %p143, %p144
      %p147 = scmp.ne.s32.totalorder %s130, %s146
      %p148 = scmp.eq.s32.totalorder %s19, 0
      %p149 = por %p147, %p148
      %p150 = scmp.le.s32.totalorder 1, %s13
      %p151 = scmp.lt.s32.totalorder %s13, 3
      %p152 = pnand %p150, %p151
      %p153 = pneg %p152
      // Predicated region
      $region9: #{tpu_custom_call.1} parent=5 // pred_check
        _
      $region10: #{tpu_custom_call.1} parent=5 // pred_check_branch
        %155 = sbr.rel (%p152) target = $region12
      $region11: #{tpu_custom_call.1} parent=5 // pred_region
        %s156 = ssub.s32 %s13, 1
        // Predicated region
        $region13: #{tpu_custom_call.1} parent=11 // pred_check
          %p157 = pneg %p72
        $region14: #{tpu_custom_call.1} parent=11 // pred_check_branch
          %159 = sbr.rel (%p157) target = $region16
        $region15: #{tpu_custom_call.1} parent=11 // pred_region
          _
        $region16: #{tpu_custom_call.1} parent=11 // pred_fallthru
          _
        // Predicated region
        $region17: #{tpu_custom_call.1} parent=11 // pred_check
          %p160 = pneg %p93
        $region18: #{tpu_custom_call.1} parent=11 // pred_check_branch
          %162 = sbr.rel (%p160) target = $region20
        $region19: #{tpu_custom_call.1} parent=11 // pred_region
          _
        $region20: #{tpu_custom_call.1} parent=11 // pred_fallthru
          _
        // Predicated region
        $region21: #{tpu_custom_call.1} parent=11 // pred_check
          %p163 = pneg %p114
        $region22: #{tpu_custom_call.1} parent=11 // pred_check_branch
          %165 = sbr.rel (%p163) target = $region24
        $region23: #{tpu_custom_call.1} parent=11 // pred_region
          _
        $region24: #{tpu_custom_call.1} parent=11 // pred_fallthru
          _
      $region12: #{tpu_custom_call.1} parent=5 // pred_fallthru
        _
      %p166 = scmp.lt.s32.totalorder %s13, 2
      // Predicated region
      $region25: #{tpu_custom_call.1} parent=5 // pred_check
        %p167 = pneg %p166
      $region26: #{tpu_custom_call.1} parent=5 // pred_check_branch
        %169 = sbr.rel (%p167) target = $region28
      $region27: #{tpu_custom_call.1} parent=5 // pred_region
        // Predicated region
        $region29: #{tpu_custom_call.1} parent=27 // pred_check
          %p170 = pneg %p45
        $region30: #{tpu_custom_call.1} parent=27 // pred_check_branch
          %172 = sbr.rel (%p170) target = $region32
        $region31: #{tpu_custom_call.1} parent=27 // pred_region
          %p173 = scmp.lt.s32.totalorder %s20, 1
          %s174 = scalar_select %p173, %s20, 1
          %s175 = smul.addr %s174, 32
          %s176 = smul.addr %s175, 4
          %s177 = scalar_lea.vmem %s0, %s176
        $region32: #{tpu_custom_call.1} parent=27 // pred_fallthru
          _
      $region28: #{tpu_custom_call.1} parent=5 // pred_fallthru
        _
      %p178 = scmp.le.s32.totalorder 1, %s13
      %p179 = scmp.lt.s32.totalorder %s13, 3
      %p180 = pnand %p178, %p179
      %p181 = pneg %p180
      // Predicated region
      $region33: #{tpu_custom_call.1} parent=5 // pred_check
        _
      $region34: #{tpu_custom_call.1} parent=5 // pred_check_branch
        %183 = sbr.rel (%p180) target = $region36
      $region35: #{tpu_custom_call.1} parent=5 // pred_region
        %s184 = ssub.s32 %s13, 1
        %p185 = scmp.lt.s32.totalorder %s22, 1
        %s186 = scalar_select %p185, %s22, 1
        %s187 = smul.addr %s186, 32
        %s188 = smul.addr %s187, 4
        %s189 = scalar_lea.vmem %s0, %s188
        %p190 = pneg %p51
        %p191 = pneg %p48
        %p192 = pneg %p72
        %p193 = pneg %p69
        %p194 = pneg %p93
        %p195 = pneg %p90
        %p196 = pneg %p114
        %p197 = pneg %p111
        %p198 = pneg %p142
        %p199 = pneg %p139
        %s200 = sand.u32 %s129, 1
        %s201 = scalar_lea.sflag [#allocation3], %s200
        %s202 = sand.u32 %s129, 1
        %s203 = smul.addr %s202, 256
        %s204 = scalar_lea.vmem [#allocation2], %s203
        %p205 = scmp.lt.s32.totalorder %s22, 1
        %s206 = scalar_select %p205, %s22, 1
        %s207 = smul.addr %s206, 32
        %s208 = smul.addr %s207, 4
        %s209 = scalar_lea.vmem %s0, %s208
        %s210 = smul.u32 16, %s23
        %s212 = smul.u32 %s23, 16
        %s213 = smul.u32 %s212, 2
        %s214 = smul.addr %s213, 4
        %s215 = scalar_lea.vmem %s209, %s214
        %v216 = vld [vmem:[%s215] sm:$0xf]
        %v217 = vld [vmem:[%s215 + $0x4] sm:$0xf]
        %v218 = vld [vmem:[%s215 + $0x8] sm:$0xf]
        %v219 = vld [vmem:[%s215 + $0xc] sm:$0xf]
        %v220 = vld [vmem:[%s215 + $0x10] sm:$0xf]
        %v221 = vld [vmem:[%s215 + $0x14] sm:$0xf]
        %v222 = vld [vmem:[%s215 + $0x18] sm:$0xf]
        %v223 = vld [vmem:[%s215 + $0x1c] sm:$0xf]
        %v224 = vld [vmem:[%s215 + $0x20] sm:$0xf]
        %v225 = vld [vmem:[%s215 + $0x24] sm:$0xf]
        %v226 = vld [vmem:[%s215 + $0x28] sm:$0xf]
        %v227 = vld [vmem:[%s215 + $0x2c] sm:$0xf]
        %v228 = vld [vmem:[%s215 + $0x30] sm:$0xf]
        %v229 = vld [vmem:[%s215 + $0x34] sm:$0xf]
        %v230 = vld [vmem:[%s215 + $0x38] sm:$0xf]
        %v231 = vld [vmem:[%s215 + $0x3c] sm:$0xf]
        %v232 = vld [vmem:[%s215 + $0x40] sm:$0xf]
        %v233 = vld [vmem:[%s215 + $0x44] sm:$0xf]
        %v234 = vld [vmem:[%s215 + $0x48] sm:$0xf]
        %v235 = vld [vmem:[%s215 + $0x4c] sm:$0xf]
        %v236 = vld [vmem:[%s215 + $0x50] sm:$0xf]
        %v237 = vld [vmem:[%s215 + $0x54] sm:$0xf]
        %v238 = vld [vmem:[%s215 + $0x58] sm:$0xf]
        %v239 = vld [vmem:[%s215 + $0x5c] sm:$0xf]
        %v240 = vld [vmem:[%s215 + $0x60] sm:$0xf]
        %v241 = vld [vmem:[%s215 + $0x64] sm:$0xf]
        %v242 = vld [vmem:[%s215 + $0x68] sm:$0xf]
        %v243 = vld [vmem:[%s215 + $0x6c] sm:$0xf]
        %v244 = vld [vmem:[%s215 + $0x70] sm:$0xf]
        %v245 = vld [vmem:[%s215 + $0x74] sm:$0xf]
        %v246 = vld [vmem:[%s215 + $0x78] sm:$0xf]
        %v247 = vld [vmem:[%s215 + $0x7c] sm:$0xf]
        %v248 = vld [vmem:[%s1] sm:$0x3]
        %v281 = vunpack.c.l.b16 %v216
        %v282 = vunpack.c.l.b16 %v217
        %v283 = vunpack.c.l.b16 %v218
        %v284 = vunpack.c.l.b16 %v219
        %v285 = vunpack.c.l.b16 %v220
        %v286 = vunpack.c.l.b16 %v221
        %v287 = vunpack.c.l.b16 %v222
        %v288 = vunpack.c.l.b16 %v223
        %v289 = vunpack.c.l.b16 %v224
        %v290 = vunpack.c.l.b16 %v225
        %v291 = vunpack.c.l.b16 %v226
        %v292 = vunpack.c.l.b16 %v227
        %v293 = vunpack.c.l.b16 %v228
        %v294 = vunpack.c.l.b16 %v229
        %v295 = vunpack.c.l.b16 %v230
        %v296 = vunpack.c.l.b16 %v231
        %v297 = vunpack.c.l.b16 %v232
        %v298 = vunpack.c.l.b16 %v233
        %v299 = vunpack.c.l.b16 %v234
        %v300 = vunpack.c.l.b16 %v235
        %v301 = vunpack.c.l.b16 %v236
        %v302 = vunpack.c.l.b16 %v237
        %v303 = vunpack.c.l.b16 %v238
        %v304 = vunpack.c.l.b16 %v239
        %v305 = vunpack.c.l.b16 %v240
        %v306 = vunpack.c.l.b16 %v241
        %v307 = vunpack.c.l.b16 %v242
        %v308 = vunpack.c.l.b16 %v243
        %v309 = vunpack.c.l.b16 %v244
        %v310 = vunpack.c.l.b16 %v245
        %v311 = vunpack.c.l.b16 %v246
        %v312 = vunpack.c.l.b16 %v247
        %v313 = vpack.c.b16 %v282, %v281
        %v314 = vpack.c.b16 %v284, %v283
        %v315 = vpack.c.b16 %v286, %v285
        %v316 = vpack.c.b16 %v288, %v287
        %v317 = vpack.c.b16 %v290, %v289
        %v318 = vpack.c.b16 %v292, %v291
        %v319 = vpack.c.b16 %v294, %v293
        %v320 = vpack.c.b16 %v296, %v295
        %v321 = vpack.c.b16 %v298, %v297
        %v322 = vpack.c.b16 %v300, %v299
        %v323 = vpack.c.b16 %v302, %v301
        %v324 = vpack.c.b16 %v304, %v303
        %v325 = vpack.c.b16 %v306, %v305
        %v326 = vpack.c.b16 %v308, %v307
        %v327 = vpack.c.b16 %v310, %v309
        %v328 = vpack.c.b16 %v312, %v311
        %vm329 = vcmask 31744
        %v331 = vsel %vm329, %v313, 0
        %v334 = vsel %vm329, %v314, 0
        %v337 = vsel %vm329, %v315, 0
        %v340 = vsel %vm329, %v316, 0
        %v343 = vsel %vm329, %v317, 0
        %v346 = vsel %vm329, %v318, 0
        %v349 = vsel %vm329, %v319, 0
        %v352 = vsel %vm329, %v320, 0
        %v355 = vsel %vm329, %v321, 0
        %v358 = vsel %vm329, %v322, 0
        %v361 = vsel %vm329, %v323, 0
        %v364 = vsel %vm329, %v324, 0
        %v367 = vsel %vm329, %v325, 0
        %v370 = vsel %vm329, %v326, 0
        %v373 = vsel %vm329, %v327, 0
        %v376 = vsel %vm329, %v328, 0
        %vm378 = vcmask 1041408
        %v380 = vsel %vm378, %v248, 0
        %382 = vmatprep.subr.bf16.mxu0 0
        %383 = vmatpush1.bf16.msra.mxu0 %v380
        %384 = vmatprep.subr.bf16.mxu0 0
        %385 = vmatpush1.bf16.msra.mxu0 0
        %386 = vmatprep.subr.bf16.mxu0 0
        %387 = vmatpush1.bf16.msra.mxu0 0
        %388 = vmatprep.subr.bf16.mxu0 0
        %389 = vmatpush1.bf16.msra.mxu0 0
        %390 = vmatprep.subr.bf16.mxu0 0
        %391 = vmatpush1.bf16.msra.mxu0 0
        %392 = vmatprep.subr.bf16.mxu0 0
        %393 = vmatpush1.bf16.msra.mxu0 0
        %394 = vmatprep.subr.bf16.mxu0 0
        %395 = vmatpush1.bf16.msra.mxu0 0
        %396 = vmatprep.subr.bf16.mxu0 0
        %397 = vmatpush1.bf16.msra.mxu0 0
        %398 = vmatprep.subr.bf16.mxu0 0
        %399 = vmatpush1.bf16.msra.mxu0 0
        %400 = vmatprep.subr.bf16.mxu0 0
        %401 = vmatpush1.bf16.msra.mxu0 0
        %402 = vmatprep.subr.bf16.mxu0 0
        %403 = vmatpush1.bf16.msra.mxu0 0
        %404 = vmatprep.subr.bf16.mxu0 0
        %405 = vmatpush1.bf16.msra.mxu0 0
        %406 = vmatprep.subr.bf16.mxu0 0
        %407 = vmatpush1.bf16.msra.mxu0 0
        %408 = vmatprep.subr.bf16.mxu0 0
        %409 = vmatpush1.bf16.msra.mxu0 0
        %410 = vmatprep.subr.bf16.mxu0 0
        %411 = vmatpush1.bf16.msra.mxu0 0
        %412 = vmatprep.subr.bf16.mxu0 0
        %413 = vmatpush1.bf16.msra.mxu0 0
        %414 = vmatprep.mubr.bf16.mxu0 0
        %415 = vmatmul.mubr.bf16.gmra.mrb[0].mxu0 %v331
        %v416 = vpop.f32.mrb[0].mxu0
        %v417 = vadd.f32 0.0, %v416
        %v418 = vpop.f32.mrb[0].mxu0
        %v419 = vpop.f32.mrb[0].mxu0
        %v420 = vadd.f32 0.0, %v419
        %v421 = vpop.f32.mrb[0].mxu0
        %422 = vmatprep.mubr.bf16.mxu0 0
        %423 = vmatmul.mubr.bf16.gmra.mrb[0].mxu0 %v334
        %v424 = vpop.f32.mrb[0].mxu0
        %v425 = vadd.f32 0.0, %v424
        %v426 = vpop.f32.mrb[0].mxu0
        %v427 = vpop.f32.mrb[0].mxu0
        %v428 = vadd.f32 0.0, %v427
        %v429 = vpop.f32.mrb[0].mxu0
        %430 = vmatprep.mubr.bf16.mxu0 0
        %431 = vmatmul.mubr.bf16.gmra.mrb[0].mxu0 %v337
        %v432 = vpop.f32.mrb[0].mxu0
        %v433 = vadd.f32 0.0, %v432
        %v434 = vpop.f32.mrb[0].mxu0
        %v435 = vpop.f32.mrb[0].mxu0
        %v436 = vadd.f32 0.0, %v435
        %v437 = vpop.f32.mrb[0].mxu0
        %438 = vmatprep.mubr.bf16.mxu0 0
        %439 = vmatmul.mubr.bf16.gmra.mrb[0].mxu0 %v340
        %v440 = vpop.f32.mrb[0].mxu0
        %v441 = vadd.f32 0.0, %v440
        %v442 = vpop.f32.mrb[0].mxu0
        %v443 = vpop.f32.mrb[0].mxu0
        %v444 = vadd.f32 0.0, %v443
        %v445 = vpop.f32.mrb[0].mxu0
        %446 = vmatprep.mubr.bf16.mxu0 0
        %447 = vmatmul.mubr.bf16.gmra.mrb[0].mxu0 %v343
        %v448 = vpop.f32.mrb[0].mxu0
        %v449 = vadd.f32 0.0, %v448
        %v450 = vpop.f32.mrb[0].mxu0
        %v451 = vpop.f32.mrb[0].mxu0
        %v452 = vadd.f32 0.0, %v451
        %v453 = vpop.f32.mrb[0].mxu0
        %454 = vmatprep.mubr.bf16.mxu0 0
        %455 = vmatmul.mubr.bf16.gmra.mrb[0].mxu0 %v346
        %v456 = vpop.f32.mrb[0].mxu0
        %v457 = vadd.f32 0.0, %v456
        %v458 = vpop.f32.mrb[0].mxu0
        %v459 = vpop.f32.mrb[0].mxu0
        %v460 = vadd.f32 0.0, %v459
        %v461 = vpop.f32.mrb[0].mxu0
        %462 = vmatprep.mubr.bf16.mxu0 0
        %463 = vmatmul.mubr.bf16.gmra.mrb[0].mxu0 %v349
        %v464 = vpop.f32.mrb[0].mxu0
        %v465 = vadd.f32 0.0, %v464
        %v466 = vpop.f32.mrb[0].mxu0
        %v467 = vpop.f32.mrb[0].mxu0
        %v468 = vadd.f32 0.0, %v467
        %v469 = vpop.f32.mrb[0].mxu0
        %470 = vmatprep.mubr.bf16.mxu0 0
        %471 = vmatmul.mubr.bf16.gmra.mrb[0].mxu0 %v352
        %v472 = vpop.f32.mrb[0].mxu0
        %v473 = vadd.f32 0.0, %v472
        %v474 = vpop.f32.mrb[0].mxu0
        %v475 = vpop.f32.mrb[0].mxu0
        %v476 = vadd.f32 0.0, %v475
        %v477 = vpop.f32.mrb[0].mxu0
        %478 = vmatprep.mubr.bf16.mxu0 0
        %479 = vmatmul.mubr.bf16.gmra.mrb[0].mxu0 %v355
        %v480 = vpop.f32.mrb[0].mxu0
        %v481 = vadd.f32 0.0, %v480
        %v482 = vpop.f32.mrb[0].mxu0
        %v483 = vpop.f32.mrb[0].mxu0
        %v484 = vadd.f32 0.0, %v483
        %v485 = vpop.f32.mrb[0].mxu0
        %486 = vmatprep.mubr.bf16.mxu0 0
        %487 = vmatmul.mubr.bf16.gmra.mrb[0].mxu0 %v358
        %v488 = vpop.f32.mrb[0].mxu0
        %v489 = vadd.f32 0.0, %v488
        %v490 = vpop.f32.mrb[0].mxu0
        %v491 = vpop.f32.mrb[0].mxu0
        %v492 = vadd.f32 0.0, %v491
        %v493 = vpop.f32.mrb[0].mxu0
        %494 = vmatprep.mubr.bf16.mxu0 0
        %495 = vmatmul.mubr.bf16.gmra.mrb[0].mxu0 %v361
        %v496 = vpop.f32.mrb[0].mxu0
        %v497 = vadd.f32 0.0, %v496
        %v498 = vpop.f32.mrb[0].mxu0
        %v499 = vpop.f32.mrb[0].mxu0
        %v500 = vadd.f32 0.0, %v499
        %v501 = vpop.f32.mrb[0].mxu0
        %502 = vmatprep.mubr.bf16.mxu0 0
        %503 = vmatmul.mubr.bf16.gmra.mrb[0].mxu0 %v364
        %v504 = vpop.f32.mrb[0].mxu0
        %v505 = vadd.f32 0.0, %v504
        %v506 = vpop.f32.mrb[0].mxu0
        %v507 = vpop.f32.mrb[0].mxu0
        %v508 = vadd.f32 0.0, %v507
        %v509 = vpop.f32.mrb[0].mxu0
        %510 = vmatprep.mubr.bf16.mxu0 0
        %511 = vmatmul.mubr.bf16.gmra.mrb[0].mxu0 %v367
        %v512 = vpop.f32.mrb[0].mxu0
        %v513 = vadd.f32 0.0, %v512
        %v514 = vpop.f32.mrb[0].mxu0
        %v515 = vpop.f32.mrb[0].mxu0
        %v516 = vadd.f32 0.0, %v515
        %v517 = vpop.f32.mrb[0].mxu0
        %518 = vmatprep.mubr.bf16.mxu0 0
        %519 = vmatmul.mubr.bf16.gmra.mrb[0].mxu0 %v370
        %v520 = vpop.f32.mrb[0].mxu0
        %v521 = vadd.f32 0.0, %v520
        %v522 = vpop.f32.mrb[0].mxu0
        %v523 = vpop.f32.mrb[0].mxu0
        %v524 = vadd.f32 0.0, %v523
        %v525 = vpop.f32.mrb[0].mxu0
        %526 = vmatprep.mubr.bf16.mxu0 0
        %527 = vmatmul.mubr.bf16.gmra.mrb[0].mxu0 %v373
        %v528 = vpop.f32.mrb[0].mxu0
        %v529 = vadd.f32 0.0, %v528
        %v530 = vpop.f32.mrb[0].mxu0
        %v531 = vpop.f32.mrb[0].mxu0
        %v532 = vadd.f32 0.0, %v531
        %v533 = vpop.f32.mrb[0].mxu0
        %534 = vmatprep.mubr.bf16.mxu0 0
        %535 = vmatmul.mubr.bf16.gmra.mrb[0].mxu0 %v376
        %v536 = vpop.f32.mrb[0].mxu0
        %v537 = vadd.f32 0.0, %v536
        %v538 = vpop.f32.mrb[0].mxu0
        %v539 = vpop.f32.mrb[0].mxu0
        %v540 = vadd.f32 0.0, %v539
        %v541 = vpop.f32.mrb[0].mxu0
        %542 = vdwg.mxu0
        %v543 = vld [vmem:[%s2] sm:$0x1]
        %v545 = vlaneseq
        %v546 = vshrl.u32 %v545, 7
        %v547 = vsub.s32 0, %v546
        %v548 = vrot.slane %v543, %v547
        %v550 = vmul.f32 %v417, %v548
        %v551 = vmul.f32 %v420, %v548
        %v552 = vmul.f32 %v425, %v548
        %v553 = vmul.f32 %v428, %v548
        %v554 = vmul.f32 %v433, %v548
        %v555 = vmul.f32 %v436, %v548
        %v556 = vmul.f32 %v441, %v548
        %v557 = vmul.f32 %v444, %v548
        %v558 = vmul.f32 %v449, %v548
        %v559 = vmul.f32 %v452, %v548
        %v560 = vmul.f32 %v457, %v548
        %v561 = vmul.f32 %v460, %v548
        %v562 = vmul.f32 %v465, %v548
        %v563 = vmul.f32 %v468, %v548
        %v564 = vmul.f32 %v473, %v548
        %v565 = vmul.f32 %v476, %v548
        %v566 = vmul.f32 %v481, %v548
        %v567 = vmul.f32 %v484, %v548
        %v568 = vmul.f32 %v489, %v548
        %v569 = vmul.f32 %v492, %v548
        %v570 = vmul.f32 %v497, %v548
        %v571 = vmul.f32 %v500, %v548
        %v572 = vmul.f32 %v505, %v548
        %v573 = vmul.f32 %v508, %v548
        %v574 = vmul.f32 %v513, %v548
        %v575 = vmul.f32 %v516, %v548
        %v576 = vmul.f32 %v521, %v548
        %v577 = vmul.f32 %v524, %v548
        %v578 = vmul.f32 %v529, %v548
        %v579 = vmul.f32 %v532, %v548
        %v580 = vmul.f32 %v537, %v548
        %v581 = vmul.f32 %v540, %v548
        %v582 = vld [vmem:[%s3] sm:$0x1]
        %v584 = vlaneseq
        %v585 = vshrl.u32 %v584, 7
        %v586 = vsub.s32 0, %v585
        %v587 = vrot.slane %v582, %v586
        %v589 = vadd.f32 %v550, %v587
        %v590 = vadd.f32 %v551, %v587
        %v591 = vadd.f32 %v552, %v587
        %v592 = vadd.f32 %v553, %v587
        %v593 = vadd.f32 %v554, %v587
        %v594 = vadd.f32 %v555, %v587
        %v595 = vadd.f32 %v556, %v587
        %v596 = vadd.f32 %v557, %v587
        %v597 = vadd.f32 %v558, %v587
        %v598 = vadd.f32 %v559, %v587
        %v599 = vadd.f32 %v560, %v587
        %v600 = vadd.f32 %v561, %v587
        %v601 = vadd.f32 %v562, %v587
        %v602 = vadd.f32 %v563, %v587
        %v603 = vadd.f32 %v564, %v587
        %v604 = vadd.f32 %v565, %v587
        %v605 = vadd.f32 %v566, %v587
        %v606 = vadd.f32 %v567, %v587
        %v607 = vadd.f32 %v568, %v587
        %v608 = vadd.f32 %v569, %v587
        %v609 = vadd.f32 %v570, %v587
        %v610 = vadd.f32 %v571, %v587
        %v611 = vadd.f32 %v572, %v587
        %v612 = vadd.f32 %v573, %v587
        %v613 = vadd.f32 %v574, %v587
        %v614 = vadd.f32 %v575, %v587
        %v615 = vadd.f32 %v576, %v587
        %v616 = vadd.f32 %v577, %v587
        %v617 = vadd.f32 %v578, %v587
        %v618 = vadd.f32 %v579, %v587
        %v619 = vadd.f32 %v580, %v587
        %v620 = vadd.f32 %v581, %v587
        %621 = vst [vmem:[%s204] sm:$0xff] %v589
        %622 = vst [vmem:[%s204 + $0x8] sm:$0xff] %v590
        %623 = vst [vmem:[%s204 + $0x10] sm:$0xff] %v591
        %624 = vst [vmem:[%s204 + $0x18] sm:$0xff] %v592
        %625 = vst [vmem:[%s204 + $0x20] sm:$0xff] %v593
        %626 = vst [vmem:[%s204 + $0x28] sm:$0xff] %v594
        %627 = vst [vmem:[%s204 + $0x30] sm:$0xff] %v595
        %628 = vst [vmem:[%s204 + $0x38] sm:$0xff] %v596
        %629 = vst [vmem:[%s204 + $0x40] sm:$0xff] %v597
        %630 = vst [vmem:[%s204 + $0x48] sm:$0xff] %v598
        %631 = vst [vmem:[%s204 + $0x50] sm:$0xff] %v599
        %632 = vst [vmem:[%s204 + $0x58] sm:$0xff] %v600
        %633 = vst [vmem:[%s204 + $0x60] sm:$0xff] %v601
        %634 = vst [vmem:[%s204 + $0x68] sm:$0xff] %v602
        %635 = vst [vmem:[%s204 + $0x70] sm:$0xff] %v603
        %636 = vst [vmem:[%s204 + $0x78] sm:$0xff] %v604
        %637 = vst [vmem:[%s204 + $0x80] sm:$0xff] %v605
        %638 = vst [vmem:[%s204 + $0x88] sm:$0xff] %v606
        %639 = vst [vmem:[%s204 + $0x90] sm:$0xff] %v607
        %640 = vst [vmem:[%s204 + $0x98] sm:$0xff] %v608
        %641 = vst [vmem:[%s204 + $0xa0] sm:$0xff] %v609
        %642 = vst [vmem:[%s204 + $0xa8] sm:$0xff] %v610
        %643 = vst [vmem:[%s204 + $0xb0] sm:$0xff] %v611
        %644 = vst [vmem:[%s204 + $0xb8] sm:$0xff] %v612
        %645 = vst [vmem:[%s204 + $0xc0] sm:$0xff] %v613
        %646 = vst [vmem:[%s204 + $0xc8] sm:$0xff] %v614
        %647 = vst [vmem:[%s204 + $0xd0] sm:$0xff] %v615
        %648 = vst [vmem:[%s204 + $0xd8] sm:$0xff] %v616
        %649 = vst [vmem:[%s204 + $0xe0] sm:$0xff] %v617
        %650 = vst [vmem:[%s204 + $0xe8] sm:$0xff] %v618
        %651 = vst [vmem:[%s204 + $0xf0] sm:$0xff] %v619
        %652 = vst [vmem:[%s204 + $0xf8] sm:$0xff] %v620
        %s653 = sand.u32 %s129, 1
        %s654 = scalar_lea.sflag [#allocation3], %s653
        %s655 = sand.u32 %s129, 1
        %s656 = smul.addr %s655, 256
        %s657 = scalar_lea.vmem [#allocation2], %s656
        // Predicated region
        $region37: #{tpu_custom_call.1} parent=35 // pred_check
          %p658 = pneg %p139
        $region38: #{tpu_custom_call.1} parent=35 // pred_check_branch
          %660 = sbr.rel (%p658) target = $region40
        $region39: #{tpu_custom_call.1} parent=35 // pred_region
          %s661 = smul.u32 16, %s23
          %s663 = ssub.s32 4096, 4096
          %664 = vsyncadd %s654, %s663
          %s665 = smul.addr %s661, 2
          %s666 = smul.addr %s22, 32
          %s667 = sadd.s32 %s665, %s666
          %s668 = smul.addr %s667, 128
          %s669 = scalar_lea.hbm %s4, %s668
          %s670 = sshll.u32 %s657, 4
          %s671 = int_to_ptr.vmem [resolvable:$true] %s670
          %676 = dma.vmem_to_hbm [thread:$0]  %s671, 4096, %s669, %s654, 128, 128, 8
        $region40: #{tpu_custom_call.1} parent=35 // pred_fallthru
          _
      $region36: #{tpu_custom_call.1} parent=5 // pred_fallthru
        _
      %p677 = scmp.le.s32.totalorder 2, %s13
      // Predicated region
      $region41: #{tpu_custom_call.1} parent=5 // pred_check
        %p678 = pneg %p677
      $region42: #{tpu_custom_call.1} parent=5 // pred_check_branch
        %680 = sbr.rel (%p678) target = $region44
      $region43: #{tpu_custom_call.1} parent=5 // pred_region
        %s681 = ssub.s32 %s13, 2
        // Predicated region
        $region45: #{tpu_custom_call.1} parent=43 // pred_check
          %p682 = pneg %p145
        $region46: #{tpu_custom_call.1} parent=43 // pred_check_branch
          %684 = sbr.rel (%p682) target = $region48
        $region47: #{tpu_custom_call.1} parent=43 // pred_region
          %s685 = sand.u32 %s130, 1
          %s686 = scalar_lea.sflag [#allocation3], %s685
          %s687 = sand.u32 %s130, 1
          %s688 = smul.addr %s687, 256
          %s689 = scalar_lea.vmem [#allocation2], %s688
          %690 = dma.done %s686, 4096
        $region48: #{tpu_custom_call.1} parent=43 // pred_fallthru
          _
      $region44: #{tpu_custom_call.1} parent=5 // pred_fallthru
        _
    $region6: #{tpu_custom_call.1} parent=1 // loop_footer
      %s17 = sadd.s32 1, %s13
    $region7: #{tpu_custom_call.1} parent=1 // loop_footer_branch
      %12 = sbr.rel target = $region3
    $region8: #{tpu_custom_call.1} parent=1 // loop_exit
      _
    %691 = vsyncpa [#allocation3], 1
    %s692 = scalar_lea.sflag [#allocation3], 1
    %693 = vsyncpa %s692, 1

</llo_original>
